<compile_context>
chip_gen: v7x
topology: tpu7x:2x2x1
jax: 0.10.0
libtpu: 0.0.40
codegen_flags: <defaults>
</compile_context>

<pallas_src>
import jax
import jax.numpy as jnp
from jax.experimental import pallas as pl
from jax.experimental.pallas import tpu as pltpu


def _sigmoid(x):
    # tanh-based sigmoid; identical math to the fused in-kernel activation.
    return 0.5 * (jnp.tanh(0.5 * x) + 1.0)


def make_lstm_kernel(num_layers, seq_len, batch_p, hidden):
    """Build the fused LSTM+fc kernel for a fixed (num_layers, T, Bp, H)."""
    H = hidden
    T = seq_len
    Bp = batch_p

    def kernel(x_ref, *refs):
        # refs layout: [w_ih_0, w_hh_0, b_0, ..., w_ih_{L-1}, w_hh_{L-1}, b_{L-1},
        #               w_fc_padded, b_fc_padded, out_ref,
        #               gates_scratch, h_scratch_ping, h_scratch_pong]
        layer_refs = refs[: 3 * num_layers]
        w_fc_ref = refs[3 * num_layers]
        b_fc_ref = refs[3 * num_layers + 1]
        out_ref = refs[3 * num_layers + 2]
        gates_scr = refs[3 * num_layers + 3]
        h_scr = (refs[3 * num_layers + 4], refs[3 * num_layers + 5])

        # Fused-activation lane constants, hoisted once (no broadcast inside
        # the unrolled loop): sigmoid lanes (i,f,o) get scale=0.5/offset=0.5,
        # tanh lanes (g) get scale=1.0/offset=0.0, so that
        #   act = tanh(gates*scale)*scale + offset
        # yields all four gates with a single full-width EUP tanh per cell.
        lane = jax.lax.broadcasted_iota(jnp.int32, (Bp, 4 * H), 1)
        is_g = (lane >= 2 * H) & (lane < 3 * H)
        scale = jnp.where(is_g, 1.0, 0.5).astype(jnp.float32)
        offset = jnp.where(is_g, 0.0, 0.5).astype(jnp.float32)

        inp_ref = x_ref                      # (T*Bp, D_in) for the current layer
        h_last = None
        for l in range(num_layers):
            w_ih = layer_refs[3 * l][...]    # (D_in, 4H)
            w_hh = layer_refs[3 * l + 1][...]  # (H,   4H)  -> stays resident
            b = layer_refs[3 * l + 2][...]   # (1,    4H)

            # Hoisted input projection: one well-filled MXU matmul covering all
            # T timesteps of this layer; bias folded in here (off the serial
            # recurrent chain).
            gates_scr[...] = (
                jnp.dot(inp_ref[...], w_ih, preferred_element_type=jnp.float32) + b
            )

            is_last = l == num_layers - 1
            out_scr = h_scr[l % 2]           # ping-pong across layers (no RW hazard)

            def step(t, carry, _w_hh=w_hh, _is_last=is_last, _out=out_scr):
                h_prev, c_prev = carry
                row = pl.multiple_of(t * Bp, Bp)
                g_in = gates_scr[pl.ds(row, Bp), :]          # (Bp, 4H) aligned tile
                # Single MXU matmul on the serial chain.
                gates = (
                    jnp.dot(h_prev, _w_hh, preferred_element_type=jnp.float32)
                    + g_in
                )
                tg = jnp.tanh(gates * scale)                 # one full-width EUP op
                act = tg * scale + offset                    # sigmoid(i,f,o) / tanh(g)
                i_g = act[:, 0 * H:1 * H]
                f_g = act[:, 1 * H:2 * H]
                g_g = act[:, 2 * H:3 * H]
                o_g = act[:, 3 * H:4 * H]
                c_new = f_g * c_prev + i_g * g_g
                h_new = o_g * jnp.tanh(c_new)                # second EUP op
                if not _is_last:
                    _out[pl.ds(row, Bp), :] = h_new          # feed next layer
                return (h_new, c_new)

            init = (jnp.zeros((Bp, H), jnp.float32),
                    jnp.zeros((Bp, H), jnp.float32))
            h_last, _ = jax.lax.fori_loop(0, T, step, init, unroll=True)
            inp_ref = out_scr                # next layer reads this layer's h's

        # fc on the MXU; padded to 128 output lanes -> unmasked lane-dense store.
        out_ref[...] = (
            jnp.dot(h_last, w_fc_ref[...], preferred_element_type=jnp.float32)
            + b_fc_ref[...]
        )

    return kernel


def lstm_forward(x, layer_params, w_fc, b_fc):
    """x: (B, T, I) f32.
    layer_params: list of (w_ih_t (D_in, 4H), w_hh_t (H, 4H), b (1, 4H)) per layer,
      weights already transposed from PyTorch's (4H, D_in)/(4H, H); bias = b_ih + b_hh.
    w_fc: (H, O) (= torch fc.weight.T);  b_fc: (O,)."""
    B, T, I = x.shape
    H = layer_params[0][1].shape[0]
    O = w_fc.shape[1]
    O_pad = ((O + 127) // 128) * 128
    Bp = ((B + 7) // 8) * 8                  # pad batch to f32 sublane multiple

    # Wrapper-side layout plumbing (kept out of the kernel):
    #  * time-major, batch zero-padded to Bp sublanes, flattened to (T*Bp, I)
    #    so every in-kernel access is an aligned (8, lanes) tile.
    #  * fc weight/bias zero-padded to a lane-dense 128-wide output slab.
    x_tbi = jnp.transpose(x, (1, 0, 2)).astype(jnp.float32)           # (T, B, I)
    x_pad = jnp.zeros((T, Bp, I), jnp.float32).at[:, :B, :].set(x_tbi)
    x_flat = x_pad.reshape(T * Bp, I)                                 # (T*Bp, I)

    w_fc_p = jnp.zeros((H, O_pad), jnp.float32).at[:, :O].set(w_fc)
    b_fc_p = jnp.zeros((1, O_pad), jnp.float32).at[:, :O].set(b_fc.reshape(1, O))

    flat_weights = []
    for (w_ih, w_hh, b) in layer_params:
        flat_weights += [w_ih, w_hh, b]

    num_inputs = 1 + len(flat_weights) + 2
    kernel = make_lstm_kernel(num_layers=len(layer_params), seq_len=T,
                              batch_p=Bp, hidden=H)

    out_padded = pl.pallas_call(
        kernel,
        out_shape=jax.ShapeDtypeStruct((Bp, O_pad), jnp.float32),
        in_specs=[pl.BlockSpec(memory_space=pltpu.MemorySpace.VMEM)] * num_inputs,
        out_specs=pl.BlockSpec(memory_space=pltpu.MemorySpace.VMEM),
        scratch_shapes=[
            pltpu.VMEM((T * Bp, 4 * H), jnp.float32),   # hoisted input-projection slab
            pltpu.VMEM((T * Bp, H), jnp.float32),       # layer-output ping
            pltpu.VMEM((T * Bp, H), jnp.float32),       # layer-output pong
        ],
    )(x_flat, *flat_weights, w_fc_p, b_fc_p)

    return out_padded[:B, :O]


def _reference(x, layer_params, w_fc, b_fc):
    """Pure-JAX reference with identical math/layout conventions."""
    B, T, _ = x.shape
    H = layer_params[0][1].shape[0]
    hs = [jnp.zeros((B, H), jnp.float32) for _ in layer_params]
    cs = [jnp.zeros((B, H), jnp.float32) for _ in layer_params]
    for t in range(T):
        inp = x[:, t, :]
        for l, (w_ih, w_hh, b) in enumerate(layer_params):
            gates = inp @ w_ih + hs[l] @ w_hh + b
            i_g = _sigmoid(gates[:, 0 * H:1 * H])
            f_g = _sigmoid(gates[:, 1 * H:2 * H])
            g_g = jnp.tanh(gates[:, 2 * H:3 * H])
            o_g = _sigmoid(gates[:, 3 * H:4 * H])
            cs[l] = f_g * cs[l] + i_g * g_g
            hs[l] = o_g * jnp.tanh(cs[l])
            inp = hs[l]
    return hs[-1] @ w_fc + b_fc.reshape(1, -1)


if __name__ == "__main__":
    # Small shapes consistent with the module:
    B, T = 2, 8
    input_size, hidden_size, num_layers, output_size = 16, 32, 2, 8

    key = jax.random.PRNGKey(0)
    k_x, k_w = jax.random.split(key, 2)
    x = jax.random.normal(k_x, (B, T, input_size), dtype=jnp.float32)

    # PyTorch-style uniform(-k, k) init, k = 1/sqrt(hidden); weights generated
    # directly in the transposed (in, out) layout the kernel consumes; bias is
    # the combined b_ih + b_hh. Gate order along 4H is (i, f, g, o).
    kk = 1.0 / jnp.sqrt(jnp.float32(hidden_size))
    layer_params = []
    wkeys = jax.random.split(k_w, 4 * num_layers + 2)
    for l in range(num_layers):
        d_in = input_size if l == 0 else hidden_size
        w_ih = jax.random.uniform(wkeys[4 * l + 0], (d_in, 4 * hidden_size),
                                  minval=-kk, maxval=kk, dtype=jnp.float32)
        w_hh = jax.random.uniform(wkeys[4 * l + 1], (hidden_size, 4 * hidden_size),
                                  minval=-kk, maxval=kk, dtype=jnp.float32)
        b_ih = jax.random.uniform(wkeys[4 * l + 2], (1, 4 * hidden_size),
                                  minval=-kk, maxval=kk, dtype=jnp.float32)
        b_hh = jax.random.uniform(wkeys[4 * l + 3], (1, 4 * hidden_size),
                                  minval=-kk, maxval=kk, dtype=jnp.float32)
        layer_params.append((w_ih, w_hh, b_ih + b_hh))

    w_fc = jax.random.uniform(wkeys[-2], (hidden_size, output_size),
                              minval=-kk, maxval=kk, dtype=jnp.float32)
    b_fc = jax.random.uniform(wkeys[-1], (output_size,),
                              minval=-kk, maxval=kk, dtype=jnp.float32)

    out = lstm_forward(x, layer_params, w_fc, b_fc)
    out = jax.block_until_ready(out)

    ref = _reference(x, layer_params, w_fc, b_fc)
    assert out.shape == (B, output_size)
    assert jnp.allclose(out, ref, atol=1e-5, rtol=1e-5)

    print("KERNEL_OK")
</pallas_src>

<mosaic_0001>
module attributes {stable_mosaic.version = 11 : i64} {
  func.func @kernel(%arg0: memref<64x16xf32, #tpu.memory_space<vmem>>, %arg1: memref<16x128xf32, #tpu.memory_space<vmem>>, %arg2: memref<32x128xf32, #tpu.memory_space<vmem>>, %arg3: memref<1x128xf32, #tpu.memory_space<vmem>>, %arg4: memref<32x128xf32, #tpu.memory_space<vmem>>, %arg5: memref<32x128xf32, #tpu.memory_space<vmem>>, %arg6: memref<1x128xf32, #tpu.memory_space<vmem>>, %arg7: memref<32x128xf32, #tpu.memory_space<vmem>>, %arg8: memref<1x128xf32, #tpu.memory_space<vmem>>, %arg9: memref<8x128xf32, #tpu.memory_space<vmem>>, %arg10: memref<64x128xf32, #tpu.memory_space<vmem>>, %arg11: memref<64x32xf32, #tpu.memory_space<vmem>>, %arg12: memref<64x32xf32, #tpu.memory_space<vmem>>) attributes {dimension_semantics = [], scalar_prefetch = 0 : i64, scratch_operands = 3 : i64, tpu.core_type = #tpu.core_type<tc>} {
    %0 = tpu.iota {dimensions = array<i32: 1>} : vector<8x128xi32>
    %c64_i32 = arith.constant 64 : i32
    %1 = vector.broadcast %c64_i32 : i32 to vector<8x128xi32>
    %2 = arith.cmpi sge, %0, %1 : vector<8x128xi32>
    %c96_i32 = arith.constant 96 : i32
    %3 = vector.broadcast %c96_i32 : i32 to vector<8x128xi32>
    %4 = arith.cmpi slt, %0, %3 : vector<8x128xi32>
    %5 = arith.andi %2, %4 : vector<8x128xi1>
    %cst = arith.constant 1.000000e+00 : f32
    %cst_0 = arith.constant 5.000000e-01 : f32
    %6 = vector.broadcast %cst : f32 to vector<8x128xf32>
    %7 = vector.broadcast %cst_0 : f32 to vector<8x128xf32>
    %8 = arith.select %5, %6, %7 : vector<8x128xi1>, vector<8x128xf32>
    %cst_1 = arith.constant 0.000000e+00 : f32
    %cst_2 = arith.constant 5.000000e-01 : f32
    %9 = vector.broadcast %cst_1 : f32 to vector<8x128xf32>
    %10 = vector.broadcast %cst_2 : f32 to vector<8x128xf32>
    %11 = arith.select %5, %9, %10 : vector<8x128xi1>, vector<8x128xf32>
    %c0 = arith.constant 0 : index
    %c0_3 = arith.constant 0 : index
    %12 = vector.load %arg1[%c0, %c0_3] : memref<16x128xf32, #tpu.memory_space<vmem>>, vector<16x128xf32>
    %c0_4 = arith.constant 0 : index
    %c0_5 = arith.constant 0 : index
    %13 = vector.load %arg2[%c0_4, %c0_5] : memref<32x128xf32, #tpu.memory_space<vmem>>, vector<32x128xf32>
    %c0_6 = arith.constant 0 : index
    %c0_7 = arith.constant 0 : index
    %14 = vector.load %arg3[%c0_6, %c0_7] : memref<1x128xf32, #tpu.memory_space<vmem>>, vector<1x128xf32>
    %c0_8 = arith.constant 0 : index
    %c0_9 = arith.constant 0 : index
    %15 = vector.load %arg0[%c0_8, %c0_9] : memref<64x16xf32, #tpu.memory_space<vmem>>, vector<64x16xf32>
    %cst_10 = arith.constant dense<0.000000e+00> : vector<64x128xf32>
    %16 = tpu.matmul %15, %12, %cst_10 {dimension_numbers = #tpu.dot_dimension_numbers<[1], [0], [0], [1], [0, 0, 1, 1], [], []>} : vector<64x16xf32>, vector<16x128xf32>, vector<64x128xf32> -> vector<64x128xf32>
    %17 = vector.broadcast %14 : vector<1x128xf32> to vector<64x128xf32>
    %18 = arith.addf %16, %17 : vector<64x128xf32>
    %c0_11 = arith.constant 0 : index
    %c0_12 = arith.constant 0 : index
    %19 = vector.load %arg10[%c0_11, %c0_12] : memref<64x128xf32, #tpu.memory_space<vmem>>, vector<64x128xf32>
    tpu.vector_store %arg10[%c0_11, %c0_12], %18 {strides = array<i32>} : memref<64x128xf32, #tpu.memory_space<vmem>>, vector<64x128xf32>,
    %cst_13 = arith.constant 0.000000e+00 : f32
    %20 = vector.broadcast %cst_13 : f32 to vector<8x32xf32>
    %cst_14 = arith.constant 0.000000e+00 : f32
    %21 = vector.broadcast %cst_14 : f32 to vector<8x32xf32>
    %c0_i32 = arith.constant 0 : i32
    %c8_i32 = arith.constant 8 : i32
    %22 = arith.muli %c0_i32, %c8_i32 : i32
    %23 = tpu.assume_multiple %22, 8 : i32
    %24 = arith.index_cast %23 : i32 to index
    %c0_15 = arith.constant 0 : index
    %25 = vector.load %arg10[%24, %c0_15] : memref<64x128xf32, #tpu.memory_space<vmem>>, vector<8x128xf32>
    %cst_16 = arith.constant dense<0.000000e+00> : vector<8x128xf32>
    %26 = tpu.matmul %20, %13, %cst_16 {dimension_numbers = #tpu.dot_dimension_numbers<[1], [0], [0], [1], [0, 0, 1, 1], [], []>} : vector<8x32xf32>, vector<32x128xf32>, vector<8x128xf32> -> vector<8x128xf32>
    %27 = arith.addf %26, %25 : vector<8x128xf32>
    %28 = arith.mulf %27, %8 : vector<8x128xf32>
    %29 = math.tanh %28 : vector<8x128xf32>
    %30 = arith.mulf %29, %8 : vector<8x128xf32>
    %31 = arith.addf %30, %11 : vector<8x128xf32>
    %32 = vector.extract_strided_slice %31 {offsets = [0, 0], sizes = [8, 32], strides = [1, 1]} : vector<8x128xf32> to vector<8x32xf32>
    %33 = vector.extract_strided_slice %31 {offsets = [0, 32], sizes = [8, 32], strides = [1, 1]} : vector<8x128xf32> to vector<8x32xf32>
    %34 = vector.extract_strided_slice %31 {offsets = [0, 64], sizes = [8, 32], strides = [1, 1]} : vector<8x128xf32> to vector<8x32xf32>
    %35 = vector.extract_strided_slice %31 {offsets = [0, 96], sizes = [8, 32], strides = [1, 1]} : vector<8x128xf32> to vector<8x32xf32>
    %36 = arith.mulf %33, %21 : vector<8x32xf32>
    %37 = arith.mulf %32, %34 : vector<8x32xf32>
    %38 = arith.addf %36, %37 : vector<8x32xf32>
    %39 = math.tanh %38 : vector<8x32xf32>
    %40 = arith.mulf %35, %39 : vector<8x32xf32>
    %41 = arith.index_cast %23 : i32 to index
    %c0_17 = arith.constant 0 : index
    %42 = vector.load %arg11[%41, %c0_17] : memref<64x32xf32, #tpu.memory_space<vmem>>, vector<8x32xf32>
    tpu.vector_store %arg11[%41, %c0_17], %40 {strides = array<i32>} : memref<64x32xf32, #tpu.memory_space<vmem>>, vector<8x32xf32>,
    %c1_i32 = arith.constant 1 : i32
    %c8_i32_18 = arith.constant 8 : i32
    %43 = arith.muli %c1_i32, %c8_i32_18 : i32
    %44 = tpu.assume_multiple %43, 8 : i32
    %45 = arith.index_cast %44 : i32 to index
    %c0_19 = arith.constant 0 : index
    %46 = vector.load %arg10[%45, %c0_19] : memref<64x128xf32, #tpu.memory_space<vmem>>, vector<8x128xf32>
    %cst_20 = arith.constant dense<0.000000e+00> : vector<8x128xf32>
    %47 = tpu.matmul %40, %13, %cst_20 {dimension_numbers = #tpu.dot_dimension_numbers<[1], [0], [0], [1], [0, 0, 1, 1], [], []>} : vector<8x32xf32>, vector<32x128xf32>, vector<8x128xf32> -> vector<8x128xf32>
    %48 = arith.addf %47, %46 : vector<8x128xf32>
    %49 = arith.mulf %48, %8 : vector<8x128xf32>
    %50 = math.tanh %49 : vector<8x128xf32>
    %51 = arith.mulf %50, %8 : vector<8x128xf32>
    %52 = arith.addf %51, %11 : vector<8x128xf32>
    %53 = vector.extract_strided_slice %52 {offsets = [0, 0], sizes = [8, 32], strides = [1, 1]} : vector<8x128xf32> to vector<8x32xf32>
    %54 = vector.extract_strided_slice %52 {offsets = [0, 32], sizes = [8, 32], strides = [1, 1]} : vector<8x128xf32> to vector<8x32xf32>
    %55 = vector.extract_strided_slice %52 {offsets = [0, 64], sizes = [8, 32], strides = [1, 1]} : vector<8x128xf32> to vector<8x32xf32>
    %56 = vector.extract_strided_slice %52 {offsets = [0, 96], sizes = [8, 32], strides = [1, 1]} : vector<8x128xf32> to vector<8x32xf32>
    %57 = arith.mulf %54, %38 : vector<8x32xf32>
    %58 = arith.mulf %53, %55 : vector<8x32xf32>
    %59 = arith.addf %57, %58 : vector<8x32xf32>
    %60 = math.tanh %59 : vector<8x32xf32>
    %61 = arith.mulf %56, %60 : vector<8x32xf32>
    %62 = arith.index_cast %44 : i32 to index
    %c0_21 = arith.constant 0 : index
    %63 = vector.load %arg11[%62, %c0_21] : memref<64x32xf32, #tpu.memory_space<vmem>>, vector<8x32xf32>
    tpu.vector_store %arg11[%62, %c0_21], %61 {strides = array<i32>} : memref<64x32xf32, #tpu.memory_space<vmem>>, vector<8x32xf32>,
    %c2_i32 = arith.constant 2 : i32
    %c8_i32_22 = arith.constant 8 : i32
    %64 = arith.muli %c2_i32, %c8_i32_22 : i32
    %65 = tpu.assume_multiple %64, 8 : i32
    %66 = arith.index_cast %65 : i32 to index
    %c0_23 = arith.constant 0 : index
    %67 = vector.load %arg10[%66, %c0_23] : memref<64x128xf32, #tpu.memory_space<vmem>>, vector<8x128xf32>
    %cst_24 = arith.constant dense<0.000000e+00> : vector<8x128xf32>
    %68 = tpu.matmul %61, %13, %cst_24 {dimension_numbers = #tpu.dot_dimension_numbers<[1], [0], [0], [1], [0, 0, 1, 1], [], []>} : vector<8x32xf32>, vector<32x128xf32>, vector<8x128xf32> -> vector<8x128xf32>
    %69 = arith.addf %68, %67 : vector<8x128xf32>
    %70 = arith.mulf %69, %8 : vector<8x128xf32>
    %71 = math.tanh %70 : vector<8x128xf32>
    %72 = arith.mulf %71, %8 : vector<8x128xf32>
    %73 = arith.addf %72, %11 : vector<8x128xf32>
    %74 = vector.extract_strided_slice %73 {offsets = [0, 0], sizes = [8, 32], strides = [1, 1]} : vector<8x128xf32> to vector<8x32xf32>
    %75 = vector.extract_strided_slice %73 {offsets = [0, 32], sizes = [8, 32], strides = [1, 1]} : vector<8x128xf32> to vector<8x32xf32>
    %76 = vector.extract_strided_slice %73 {offsets = [0, 64], sizes = [8, 32], strides = [1, 1]} : vector<8x128xf32> to vector<8x32xf32>
    %77 = vector.extract_strided_slice %73 {offsets = [0, 96], sizes = [8, 32], strides = [1, 1]} : vector<8x128xf32> to vector<8x32xf32>
    %78 = arith.mulf %75, %59 : vector<8x32xf32>
    %79 = arith.mulf %74, %76 : vector<8x32xf32>
    %80 = arith.addf %78, %79 : vector<8x32xf32>
    %81 = math.tanh %80 : vector<8x32xf32>
    %82 = arith.mulf %77, %81 : vector<8x32xf32>
    %83 = arith.index_cast %65 : i32 to index
    %c0_25 = arith.constant 0 : index
    %84 = vector.load %arg11[%83, %c0_25] : memref<64x32xf32, #tpu.memory_space<vmem>>, vector<8x32xf32>
    tpu.vector_store %arg11[%83, %c0_25], %82 {strides = array<i32>} : memref<64x32xf32, #tpu.memory_space<vmem>>, vector<8x32xf32>,
    %c3_i32 = arith.constant 3 : i32
    %c8_i32_26 = arith.constant 8 : i32
    %85 = arith.muli %c3_i32, %c8_i32_26 : i32
    %86 = tpu.assume_multiple %85, 8 : i32
    %87 = arith.index_cast %86 : i32 to index
    %c0_27 = arith.constant 0 : index
    %88 = vector.load %arg10[%87, %c0_27] : memref<64x128xf32, #tpu.memory_space<vmem>>, vector<8x128xf32>
    %cst_28 = arith.constant dense<0.000000e+00> : vector<8x128xf32>
    %89 = tpu.matmul %82, %13, %cst_28 {dimension_numbers = #tpu.dot_dimension_numbers<[1], [0], [0], [1], [0, 0, 1, 1], [], []>} : vector<8x32xf32>, vector<32x128xf32>, vector<8x128xf32> -> vector<8x128xf32>
    %90 = arith.addf %89, %88 : vector<8x128xf32>
    %91 = arith.mulf %90, %8 : vector<8x128xf32>
    %92 = math.tanh %91 : vector<8x128xf32>
    %93 = arith.mulf %92, %8 : vector<8x128xf32>
    %94 = arith.addf %93, %11 : vector<8x128xf32>
    %95 = vector.extract_strided_slice %94 {offsets = [0, 0], sizes = [8, 32], strides = [1, 1]} : vector<8x128xf32> to vector<8x32xf32>
    %96 = vector.extract_strided_slice %94 {offsets = [0, 32], sizes = [8, 32], strides = [1, 1]} : vector<8x128xf32> to vector<8x32xf32>
    %97 = vector.extract_strided_slice %94 {offsets = [0, 64], sizes = [8, 32], strides = [1, 1]} : vector<8x128xf32> to vector<8x32xf32>
    %98 = vector.extract_strided_slice %94 {offsets = [0, 96], sizes = [8, 32], strides = [1, 1]} : vector<8x128xf32> to vector<8x32xf32>
    %99 = arith.mulf %96, %80 : vector<8x32xf32>
    %100 = arith.mulf %95, %97 : vector<8x32xf32>
    %101 = arith.addf %99, %100 : vector<8x32xf32>
    %102 = math.tanh %101 : vector<8x32xf32>
    %103 = arith.mulf %98, %102 : vector<8x32xf32>
    %104 = arith.index_cast %86 : i32 to index
    %c0_29 = arith.constant 0 : index
    %105 = vector.load %arg11[%104, %c0_29] : memref<64x32xf32, #tpu.memory_space<vmem>>, vector<8x32xf32>
    tpu.vector_store %arg11[%104, %c0_29], %103 {strides = array<i32>} : memref<64x32xf32, #tpu.memory_space<vmem>>, vector<8x32xf32>,
    %c4_i32 = arith.constant 4 : i32
    %c8_i32_30 = arith.constant 8 : i32
    %106 = arith.muli %c4_i32, %c8_i32_30 : i32
    %107 = tpu.assume_multiple %106, 8 : i32
    %108 = arith.index_cast %107 : i32 to index
    %c0_31 = arith.constant 0 : index
    %109 = vector.load %arg10[%108, %c0_31] : memref<64x128xf32, #tpu.memory_space<vmem>>, vector<8x128xf32>
    %cst_32 = arith.constant dense<0.000000e+00> : vector<8x128xf32>
    %110 = tpu.matmul %103, %13, %cst_32 {dimension_numbers = #tpu.dot_dimension_numbers<[1], [0], [0], [1], [0, 0, 1, 1], [], []>} : vector<8x32xf32>, vector<32x128xf32>, vector<8x128xf32> -> vector<8x128xf32>
    %111 = arith.addf %110, %109 : vector<8x128xf32>
    %112 = arith.mulf %111, %8 : vector<8x128xf32>
    %113 = math.tanh %112 : vector<8x128xf32>
    %114 = arith.mulf %113, %8 : vector<8x128xf32>
    %115 = arith.addf %114, %11 : vector<8x128xf32>
    %116 = vector.extract_strided_slice %115 {offsets = [0, 0], sizes = [8, 32], strides = [1, 1]} : vector<8x128xf32> to vector<8x32xf32>
    %117 = vector.extract_strided_slice %115 {offsets = [0, 32], sizes = [8, 32], strides = [1, 1]} : vector<8x128xf32> to vector<8x32xf32>
    %118 = vector.extract_strided_slice %115 {offsets = [0, 64], sizes = [8, 32], strides = [1, 1]} : vector<8x128xf32> to vector<8x32xf32>
    %119 = vector.extract_strided_slice %115 {offsets = [0, 96], sizes = [8, 32], strides = [1, 1]} : vector<8x128xf32> to vector<8x32xf32>
    %120 = arith.mulf %117, %101 : vector<8x32xf32>
    %121 = arith.mulf %116, %118 : vector<8x32xf32>
    %122 = arith.addf %120, %121 : vector<8x32xf32>
    %123 = math.tanh %122 : vector<8x32xf32>
    %124 = arith.mulf %119, %123 : vector<8x32xf32>
    %125 = arith.index_cast %107 : i32 to index
    %c0_33 = arith.constant 0 : index
    %126 = vector.load %arg11[%125, %c0_33] : memref<64x32xf32, #tpu.memory_space<vmem>>, vector<8x32xf32>
    tpu.vector_store %arg11[%125, %c0_33], %124 {strides = array<i32>} : memref<64x32xf32, #tpu.memory_space<vmem>>, vector<8x32xf32>,
    %c5_i32 = arith.constant 5 : i32
    %c8_i32_34 = arith.constant 8 : i32
    %127 = arith.muli %c5_i32, %c8_i32_34 : i32
    %128 = tpu.assume_multiple %127, 8 : i32
    %129 = arith.index_cast %128 : i32 to index
    %c0_35 = arith.constant 0 : index
    %130 = vector.load %arg10[%129, %c0_35] : memref<64x128xf32, #tpu.memory_space<vmem>>, vector<8x128xf32>
    %cst_36 = arith.constant dense<0.000000e+00> : vector<8x128xf32>
    %131 = tpu.matmul %124, %13, %cst_36 {dimension_numbers = #tpu.dot_dimension_numbers<[1], [0], [0], [1], [0, 0, 1, 1], [], []>} : vector<8x32xf32>, vector<32x128xf32>, vector<8x128xf32> -> vector<8x128xf32>
    %132 = arith.addf %131, %130 : vector<8x128xf32>
    %133 = arith.mulf %132, %8 : vector<8x128xf32>
    %134 = math.tanh %133 : vector<8x128xf32>
    %135 = arith.mulf %134, %8 : vector<8x128xf32>
    %136 = arith.addf %135, %11 : vector<8x128xf32>
    %137 = vector.extract_strided_slice %136 {offsets = [0, 0], sizes = [8, 32], strides = [1, 1]} : vector<8x128xf32> to vector<8x32xf32>
    %138 = vector.extract_strided_slice %136 {offsets = [0, 32], sizes = [8, 32], strides = [1, 1]} : vector<8x128xf32> to vector<8x32xf32>
    %139 = vector.extract_strided_slice %136 {offsets = [0, 64], sizes = [8, 32], strides = [1, 1]} : vector<8x128xf32> to vector<8x32xf32>
    %140 = vector.extract_strided_slice %136 {offsets = [0, 96], sizes = [8, 32], strides = [1, 1]} : vector<8x128xf32> to vector<8x32xf32>
    %141 = arith.mulf %138, %122 : vector<8x32xf32>
    %142 = arith.mulf %137, %139 : vector<8x32xf32>
    %143 = arith.addf %141, %142 : vector<8x32xf32>
    %144 = math.tanh %143 : vector<8x32xf32>
    %145 = arith.mulf %140, %144 : vector<8x32xf32>
    %146 = arith.index_cast %128 : i32 to index
    %c0_37 = arith.constant 0 : index
    %147 = vector.load %arg11[%146, %c0_37] : memref<64x32xf32, #tpu.memory_space<vmem>>, vector<8x32xf32>
    tpu.vector_store %arg11[%146, %c0_37], %145 {strides = array<i32>} : memref<64x32xf32, #tpu.memory_space<vmem>>, vector<8x32xf32>,
    %c6_i32 = arith.constant 6 : i32
    %c8_i32_38 = arith.constant 8 : i32
    %148 = arith.muli %c6_i32, %c8_i32_38 : i32
    %149 = tpu.assume_multiple %148, 8 : i32
    %150 = arith.index_cast %149 : i32 to index
    %c0_39 = arith.constant 0 : index
    %151 = vector.load %arg10[%150, %c0_39] : memref<64x128xf32, #tpu.memory_space<vmem>>, vector<8x128xf32>
    %cst_40 = arith.constant dense<0.000000e+00> : vector<8x128xf32>
    %152 = tpu.matmul %145, %13, %cst_40 {dimension_numbers = #tpu.dot_dimension_numbers<[1], [0], [0], [1], [0, 0, 1, 1], [], []>} : vector<8x32xf32>, vector<32x128xf32>, vector<8x128xf32> -> vector<8x128xf32>
    %153 = arith.addf %152, %151 : vector<8x128xf32>
    %154 = arith.mulf %153, %8 : vector<8x128xf32>
    %155 = math.tanh %154 : vector<8x128xf32>
    %156 = arith.mulf %155, %8 : vector<8x128xf32>
    %157 = arith.addf %156, %11 : vector<8x128xf32>
    %158 = vector.extract_strided_slice %157 {offsets = [0, 0], sizes = [8, 32], strides = [1, 1]} : vector<8x128xf32> to vector<8x32xf32>
    %159 = vector.extract_strided_slice %157 {offsets = [0, 32], sizes = [8, 32], strides = [1, 1]} : vector<8x128xf32> to vector<8x32xf32>
    %160 = vector.extract_strided_slice %157 {offsets = [0, 64], sizes = [8, 32], strides = [1, 1]} : vector<8x128xf32> to vector<8x32xf32>
    %161 = vector.extract_strided_slice %157 {offsets = [0, 96], sizes = [8, 32], strides = [1, 1]} : vector<8x128xf32> to vector<8x32xf32>
    %162 = arith.mulf %159, %143 : vector<8x32xf32>
    %163 = arith.mulf %158, %160 : vector<8x32xf32>
    %164 = arith.addf %162, %163 : vector<8x32xf32>
    %165 = math.tanh %164 : vector<8x32xf32>
    %166 = arith.mulf %161, %165 : vector<8x32xf32>
    %167 = arith.index_cast %149 : i32 to index
    %c0_41 = arith.constant 0 : index
    %168 = vector.load %arg11[%167, %c0_41] : memref<64x32xf32, #tpu.memory_space<vmem>>, vector<8x32xf32>
    tpu.vector_store %arg11[%167, %c0_41], %166 {strides = array<i32>} : memref<64x32xf32, #tpu.memory_space<vmem>>, vector<8x32xf32>,
    %c7_i32 = arith.constant 7 : i32
    %c8_i32_42 = arith.constant 8 : i32
    %169 = arith.muli %c7_i32, %c8_i32_42 : i32
    %170 = tpu.assume_multiple %169, 8 : i32
    %171 = arith.index_cast %170 : i32 to index
    %c0_43 = arith.constant 0 : index
    %172 = vector.load %arg10[%171, %c0_43] : memref<64x128xf32, #tpu.memory_space<vmem>>, vector<8x128xf32>
    %cst_44 = arith.constant dense<0.000000e+00> : vector<8x128xf32>
    %173 = tpu.matmul %166, %13, %cst_44 {dimension_numbers = #tpu.dot_dimension_numbers<[1], [0], [0], [1], [0, 0, 1, 1], [], []>} : vector<8x32xf32>, vector<32x128xf32>, vector<8x128xf32> -> vector<8x128xf32>
    %174 = arith.addf %173, %172 : vector<8x128xf32>
    %175 = arith.mulf %174, %8 : vector<8x128xf32>
    %176 = math.tanh %175 : vector<8x128xf32>
    %177 = arith.mulf %176, %8 : vector<8x128xf32>
    %178 = arith.addf %177, %11 : vector<8x128xf32>
    %179 = vector.extract_strided_slice %178 {offsets = [0, 0], sizes = [8, 32], strides = [1, 1]} : vector<8x128xf32> to vector<8x32xf32>
    %180 = vector.extract_strided_slice %178 {offsets = [0, 32], sizes = [8, 32], strides = [1, 1]} : vector<8x128xf32> to vector<8x32xf32>
    %181 = vector.extract_strided_slice %178 {offsets = [0, 64], sizes = [8, 32], strides = [1, 1]} : vector<8x128xf32> to vector<8x32xf32>
    %182 = vector.extract_strided_slice %178 {offsets = [0, 96], sizes = [8, 32], strides = [1, 1]} : vector<8x128xf32> to vector<8x32xf32>
    %183 = arith.mulf %180, %164 : vector<8x32xf32>
    %184 = arith.mulf %179, %181 : vector<8x32xf32>
    %185 = arith.addf %183, %184 : vector<8x32xf32>
    %186 = math.tanh %185 : vector<8x32xf32>
    %187 = arith.mulf %182, %186 : vector<8x32xf32>
    %188 = arith.index_cast %170 : i32 to index
    %c0_45 = arith.constant 0 : index
    %189 = vector.load %arg11[%188, %c0_45] : memref<64x32xf32, #tpu.memory_space<vmem>>, vector<8x32xf32>
    tpu.vector_store %arg11[%188, %c0_45], %187 {strides = array<i32>} : memref<64x32xf32, #tpu.memory_space<vmem>>, vector<8x32xf32>,
    %c8_i32_46 = arith.constant 8 : i32
    %c0_47 = arith.constant 0 : index
    %c0_48 = arith.constant 0 : index
    %190 = vector.load %arg4[%c0_47, %c0_48] : memref<32x128xf32, #tpu.memory_space<vmem>>, vector<32x128xf32>
    %c0_49 = arith.constant 0 : index
    %c0_50 = arith.constant 0 : index
    %191 = vector.load %arg5[%c0_49, %c0_50] : memref<32x128xf32, #tpu.memory_space<vmem>>, vector<32x128xf32>
    %c0_51 = arith.constant 0 : index
    %c0_52 = arith.constant 0 : index
    %192 = vector.load %arg6[%c0_51, %c0_52] : memref<1x128xf32, #tpu.memory_space<vmem>>, vector<1x128xf32>
    %c0_53 = arith.constant 0 : index
    %c0_54 = arith.constant 0 : index
    %193 = vector.load %arg11[%c0_53, %c0_54] : memref<64x32xf32, #tpu.memory_space<vmem>>, vector<64x32xf32>
    %cst_55 = arith.constant dense<0.000000e+00> : vector<64x128xf32>
    %194 = tpu.matmul %193, %190, %cst_55 {dimension_numbers = #tpu.dot_dimension_numbers<[1], [0], [0], [1], [0, 0, 1, 1], [], []>} : vector<64x32xf32>, vector<32x128xf32>, vector<64x128xf32> -> vector<64x128xf32>
    %195 = vector.broadcast %192 : vector<1x128xf32> to vector<64x128xf32>
    %196 = arith.addf %194, %195 : vector<64x128xf32>
    %c0_56 = arith.constant 0 : index
    %c0_57 = arith.constant 0 : index
    %197 = vector.load %arg10[%c0_56, %c0_57] : memref<64x128xf32, #tpu.memory_space<vmem>>, vector<64x128xf32>
    tpu.vector_store %arg10[%c0_56, %c0_57], %196 {strides = array<i32>} : memref<64x128xf32, #tpu.memory_space<vmem>>, vector<64x128xf32>,
    %cst_58 = arith.constant 0.000000e+00 : f32
    %198 = vector.broadcast %cst_58 : f32 to vector<8x32xf32>
    %cst_59 = arith.constant 0.000000e+00 : f32
    %199 = vector.broadcast %cst_59 : f32 to vector<8x32xf32>
    %c0_i32_60 = arith.constant 0 : i32
    %c8_i32_61 = arith.constant 8 : i32
    %200 = arith.muli %c0_i32_60, %c8_i32_61 : i32
    %201 = tpu.assume_multiple %200, 8 : i32
    %202 = arith.index_cast %201 : i32 to index
    %c0_62 = arith.constant 0 : index
    %203 = vector.load %arg10[%202, %c0_62] : memref<64x128xf32, #tpu.memory_space<vmem>>, vector<8x128xf32>
    %cst_63 = arith.constant dense<0.000000e+00> : vector<8x128xf32>
    %204 = tpu.matmul %198, %191, %cst_63 {dimension_numbers = #tpu.dot_dimension_numbers<[1], [0], [0], [1], [0, 0, 1, 1], [], []>} : vector<8x32xf32>, vector<32x128xf32>, vector<8x128xf32> -> vector<8x128xf32>
    %205 = arith.addf %204, %203 : vector<8x128xf32>
    %206 = arith.mulf %205, %8 : vector<8x128xf32>
    %207 = math.tanh %206 : vector<8x128xf32>
    %208 = arith.mulf %207, %8 : vector<8x128xf32>
    %209 = arith.addf %208, %11 : vector<8x128xf32>
    %210 = vector.extract_strided_slice %209 {offsets = [0, 0], sizes = [8, 32], strides = [1, 1]} : vector<8x128xf32> to vector<8x32xf32>
    %211 = vector.extract_strided_slice %209 {offsets = [0, 32], sizes = [8, 32], strides = [1, 1]} : vector<8x128xf32> to vector<8x32xf32>
    %212 = vector.extract_strided_slice %209 {offsets = [0, 64], sizes = [8, 32], strides = [1, 1]} : vector<8x128xf32> to vector<8x32xf32>
    %213 = vector.extract_strided_slice %209 {offsets = [0, 96], sizes = [8, 32], strides = [1, 1]} : vector<8x128xf32> to vector<8x32xf32>
    %214 = arith.mulf %211, %199 : vector<8x32xf32>
    %215 = arith.mulf %210, %212 : vector<8x32xf32>
    %216 = arith.addf %214, %215 : vector<8x32xf32>
    %217 = math.tanh %216 : vector<8x32xf32>
    %218 = arith.mulf %213, %217 : vector<8x32xf32>
    %c1_i32_64 = arith.constant 1 : i32
    %c8_i32_65 = arith.constant 8 : i32
    %219 = arith.muli %c1_i32_64, %c8_i32_65 : i32
    %220 = tpu.assume_multiple %219, 8 : i32
    %221 = arith.index_cast %220 : i32 to index
    %c0_66 = arith.constant 0 : index
    %222 = vector.load %arg10[%221, %c0_66] : memref<64x128xf32, #tpu.memory_space<vmem>>, vector<8x128xf32>
    %cst_67 = arith.constant dense<0.000000e+00> : vector<8x128xf32>
    %223 = tpu.matmul %218, %191, %cst_67 {dimension_numbers = #tpu.dot_dimension_numbers<[1], [0], [0], [1], [0, 0, 1, 1], [], []>} : vector<8x32xf32>, vector<32x128xf32>, vector<8x128xf32> -> vector<8x128xf32>
    %224 = arith.addf %223, %222 : vector<8x128xf32>
    %225 = arith.mulf %224, %8 : vector<8x128xf32>
    %226 = math.tanh %225 : vector<8x128xf32>
    %227 = arith.mulf %226, %8 : vector<8x128xf32>
    %228 = arith.addf %227, %11 : vector<8x128xf32>
    %229 = vector.extract_strided_slice %228 {offsets = [0, 0], sizes = [8, 32], strides = [1, 1]} : vector<8x128xf32> to vector<8x32xf32>
    %230 = vector.extract_strided_slice %228 {offsets = [0, 32], sizes = [8, 32], strides = [1, 1]} : vector<8x128xf32> to vector<8x32xf32>
    %231 = vector.extract_strided_slice %228 {offsets = [0, 64], sizes = [8, 32], strides = [1, 1]} : vector<8x128xf32> to vector<8x32xf32>
    %232 = vector.extract_strided_slice %228 {offsets = [0, 96], sizes = [8, 32], strides = [1, 1]} : vector<8x128xf32> to vector<8x32xf32>
    %233 = arith.mulf %230, %216 : vector<8x32xf32>
    %234 = arith.mulf %229, %231 : vector<8x32xf32>
    %235 = arith.addf %233, %234 : vector<8x32xf32>
    %236 = math.tanh %235 : vector<8x32xf32>
    %237 = arith.mulf %232, %236 : vector<8x32xf32>
    %c2_i32_68 = arith.constant 2 : i32
    %c8_i32_69 = arith.constant 8 : i32
    %238 = arith.muli %c2_i32_68, %c8_i32_69 : i32
    %239 = tpu.assume_multiple %238, 8 : i32
    %240 = arith.index_cast %239 : i32 to index
    %c0_70 = arith.constant 0 : index
    %241 = vector.load %arg10[%240, %c0_70] : memref<64x128xf32, #tpu.memory_space<vmem>>, vector<8x128xf32>
    %cst_71 = arith.constant dense<0.000000e+00> : vector<8x128xf32>
    %242 = tpu.matmul %237, %191, %cst_71 {dimension_numbers = #tpu.dot_dimension_numbers<[1], [0], [0], [1], [0, 0, 1, 1], [], []>} : vector<8x32xf32>, vector<32x128xf32>, vector<8x128xf32> -> vector<8x128xf32>
    %243 = arith.addf %242, %241 : vector<8x128xf32>
    %244 = arith.mulf %243, %8 : vector<8x128xf32>
    %245 = math.tanh %244 : vector<8x128xf32>
    %246 = arith.mulf %245, %8 : vector<8x128xf32>
    %247 = arith.addf %246, %11 : vector<8x128xf32>
    %248 = vector.extract_strided_slice %247 {offsets = [0, 0], sizes = [8, 32], strides = [1, 1]} : vector<8x128xf32> to vector<8x32xf32>
    %249 = vector.extract_strided_slice %247 {offsets = [0, 32], sizes = [8, 32], strides = [1, 1]} : vector<8x128xf32> to vector<8x32xf32>
    %250 = vector.extract_strided_slice %247 {offsets = [0, 64], sizes = [8, 32], strides = [1, 1]} : vector<8x128xf32> to vector<8x32xf32>
    %251 = vector.extract_strided_slice %247 {offsets = [0, 96], sizes = [8, 32], strides = [1, 1]} : vector<8x128xf32> to vector<8x32xf32>
    %252 = arith.mulf %249, %235 : vector<8x32xf32>
    %253 = arith.mulf %248, %250 : vector<8x32xf32>
    %254 = arith.addf %252, %253 : vector<8x32xf32>
    %255 = math.tanh %254 : vector<8x32xf32>
    %256 = arith.mulf %251, %255 : vector<8x32xf32>
    %c3_i32_72 = arith.constant 3 : i32
    %c8_i32_73 = arith.constant 8 : i32
    %257 = arith.muli %c3_i32_72, %c8_i32_73 : i32
    %258 = tpu.assume_multiple %257, 8 : i32
    %259 = arith.index_cast %258 : i32 to index
    %c0_74 = arith.constant 0 : index
    %260 = vector.load %arg10[%259, %c0_74] : memref<64x128xf32, #tpu.memory_space<vmem>>, vector<8x128xf32>
    %cst_75 = arith.constant dense<0.000000e+00> : vector<8x128xf32>
    %261 = tpu.matmul %256, %191, %cst_75 {dimension_numbers = #tpu.dot_dimension_numbers<[1], [0], [0], [1], [0, 0, 1, 1], [], []>} : vector<8x32xf32>, vector<32x128xf32>, vector<8x128xf32> -> vector<8x128xf32>
    %262 = arith.addf %261, %260 : vector<8x128xf32>
    %263 = arith.mulf %262, %8 : vector<8x128xf32>
    %264 = math.tanh %263 : vector<8x128xf32>
    %265 = arith.mulf %264, %8 : vector<8x128xf32>
    %266 = arith.addf %265, %11 : vector<8x128xf32>
    %267 = vector.extract_strided_slice %266 {offsets = [0, 0], sizes = [8, 32], strides = [1, 1]} : vector<8x128xf32> to vector<8x32xf32>
    %268 = vector.extract_strided_slice %266 {offsets = [0, 32], sizes = [8, 32], strides = [1, 1]} : vector<8x128xf32> to vector<8x32xf32>
    %269 = vector.extract_strided_slice %266 {offsets = [0, 64], sizes = [8, 32], strides = [1, 1]} : vector<8x128xf32> to vector<8x32xf32>
    %270 = vector.extract_strided_slice %266 {offsets = [0, 96], sizes = [8, 32], strides = [1, 1]} : vector<8x128xf32> to vector<8x32xf32>
    %271 = arith.mulf %268, %254 : vector<8x32xf32>
    %272 = arith.mulf %267, %269 : vector<8x32xf32>
    %273 = arith.addf %271, %272 : vector<8x32xf32>
    %274 = math.tanh %273 : vector<8x32xf32>
    %275 = arith.mulf %270, %274 : vector<8x32xf32>
    %c4_i32_76 = arith.constant 4 : i32
    %c8_i32_77 = arith.constant 8 : i32
    %276 = arith.muli %c4_i32_76, %c8_i32_77 : i32
    %277 = tpu.assume_multiple %276, 8 : i32
    %278 = arith.index_cast %277 : i32 to index
    %c0_78 = arith.constant 0 : index
    %279 = vector.load %arg10[%278, %c0_78] : memref<64x128xf32, #tpu.memory_space<vmem>>, vector<8x128xf32>
    %cst_79 = arith.constant dense<0.000000e+00> : vector<8x128xf32>
    %280 = tpu.matmul %275, %191, %cst_79 {dimension_numbers = #tpu.dot_dimension_numbers<[1], [0], [0], [1], [0, 0, 1, 1], [], []>} : vector<8x32xf32>, vector<32x128xf32>, vector<8x128xf32> -> vector<8x128xf32>
    %281 = arith.addf %280, %279 : vector<8x128xf32>
    %282 = arith.mulf %281, %8 : vector<8x128xf32>
    %283 = math.tanh %282 : vector<8x128xf32>
    %284 = arith.mulf %283, %8 : vector<8x128xf32>
    %285 = arith.addf %284, %11 : vector<8x128xf32>
    %286 = vector.extract_strided_slice %285 {offsets = [0, 0], sizes = [8, 32], strides = [1, 1]} : vector<8x128xf32> to vector<8x32xf32>
    %287 = vector.extract_strided_slice %285 {offsets = [0, 32], sizes = [8, 32], strides = [1, 1]} : vector<8x128xf32> to vector<8x32xf32>
    %288 = vector.extract_strided_slice %285 {offsets = [0, 64], sizes = [8, 32], strides = [1, 1]} : vector<8x128xf32> to vector<8x32xf32>
    %289 = vector.extract_strided_slice %285 {offsets = [0, 96], sizes = [8, 32], strides = [1, 1]} : vector<8x128xf32> to vector<8x32xf32>
    %290 = arith.mulf %287, %273 : vector<8x32xf32>
    %291 = arith.mulf %286, %288 : vector<8x32xf32>
    %292 = arith.addf %290, %291 : vector<8x32xf32>
    %293 = math.tanh %292 : vector<8x32xf32>
    %294 = arith.mulf %289, %293 : vector<8x32xf32>
    %c5_i32_80 = arith.constant 5 : i32
    %c8_i32_81 = arith.constant 8 : i32
    %295 = arith.muli %c5_i32_80, %c8_i32_81 : i32
    %296 = tpu.assume_multiple %295, 8 : i32
    %297 = arith.index_cast %296 : i32 to index
    %c0_82 = arith.constant 0 : index
    %298 = vector.load %arg10[%297, %c0_82] : memref<64x128xf32, #tpu.memory_space<vmem>>, vector<8x128xf32>
    %cst_83 = arith.constant dense<0.000000e+00> : vector<8x128xf32>
    %299 = tpu.matmul %294, %191, %cst_83 {dimension_numbers = #tpu.dot_dimension_numbers<[1], [0], [0], [1], [0, 0, 1, 1], [], []>} : vector<8x32xf32>, vector<32x128xf32>, vector<8x128xf32> -> vector<8x128xf32>
    %300 = arith.addf %299, %298 : vector<8x128xf32>
    %301 = arith.mulf %300, %8 : vector<8x128xf32>
    %302 = math.tanh %301 : vector<8x128xf32>
    %303 = arith.mulf %302, %8 : vector<8x128xf32>
    %304 = arith.addf %303, %11 : vector<8x128xf32>
    %305 = vector.extract_strided_slice %304 {offsets = [0, 0], sizes = [8, 32], strides = [1, 1]} : vector<8x128xf32> to vector<8x32xf32>
    %306 = vector.extract_strided_slice %304 {offsets = [0, 32], sizes = [8, 32], strides = [1, 1]} : vector<8x128xf32> to vector<8x32xf32>
    %307 = vector.extract_strided_slice %304 {offsets = [0, 64], sizes = [8, 32], strides = [1, 1]} : vector<8x128xf32> to vector<8x32xf32>
    %308 = vector.extract_strided_slice %304 {offsets = [0, 96], sizes = [8, 32], strides = [1, 1]} : vector<8x128xf32> to vector<8x32xf32>
    %309 = arith.mulf %306, %292 : vector<8x32xf32>
    %310 = arith.mulf %305, %307 : vector<8x32xf32>
    %311 = arith.addf %309, %310 : vector<8x32xf32>
    %312 = math.tanh %311 : vector<8x32xf32>
    %313 = arith.mulf %308, %312 : vector<8x32xf32>
    %c6_i32_84 = arith.constant 6 : i32
    %c8_i32_85 = arith.constant 8 : i32
    %314 = arith.muli %c6_i32_84, %c8_i32_85 : i32
    %315 = tpu.assume_multiple %314, 8 : i32
    %316 = arith.index_cast %315 : i32 to index
    %c0_86 = arith.constant 0 : index
    %317 = vector.load %arg10[%316, %c0_86] : memref<64x128xf32, #tpu.memory_space<vmem>>, vector<8x128xf32>
    %cst_87 = arith.constant dense<0.000000e+00> : vector<8x128xf32>
    %318 = tpu.matmul %313, %191, %cst_87 {dimension_numbers = #tpu.dot_dimension_numbers<[1], [0], [0], [1], [0, 0, 1, 1], [], []>} : vector<8x32xf32>, vector<32x128xf32>, vector<8x128xf32> -> vector<8x128xf32>
    %319 = arith.addf %318, %317 : vector<8x128xf32>
    %320 = arith.mulf %319, %8 : vector<8x128xf32>
    %321 = math.tanh %320 : vector<8x128xf32>
    %322 = arith.mulf %321, %8 : vector<8x128xf32>
    %323 = arith.addf %322, %11 : vector<8x128xf32>
    %324 = vector.extract_strided_slice %323 {offsets = [0, 0], sizes = [8, 32], strides = [1, 1]} : vector<8x128xf32> to vector<8x32xf32>
    %325 = vector.extract_strided_slice %323 {offsets = [0, 32], sizes = [8, 32], strides = [1, 1]} : vector<8x128xf32> to vector<8x32xf32>
    %326 = vector.extract_strided_slice %323 {offsets = [0, 64], sizes = [8, 32], strides = [1, 1]} : vector<8x128xf32> to vector<8x32xf32>
    %327 = vector.extract_strided_slice %323 {offsets = [0, 96], sizes = [8, 32], strides = [1, 1]} : vector<8x128xf32> to vector<8x32xf32>
    %328 = arith.mulf %325, %311 : vector<8x32xf32>
    %329 = arith.mulf %324, %326 : vector<8x32xf32>
    %330 = arith.addf %328, %329 : vector<8x32xf32>
    %331 = math.tanh %330 : vector<8x32xf32>
    %332 = arith.mulf %327, %331 : vector<8x32xf32>
    %c7_i32_88 = arith.constant 7 : i32
    %c8_i32_89 = arith.constant 8 : i32
    %333 = arith.muli %c7_i32_88, %c8_i32_89 : i32
    %334 = tpu.assume_multiple %333, 8 : i32
    %335 = arith.index_cast %334 : i32 to index
    %c0_90 = arith.constant 0 : index
    %336 = vector.load %arg10[%335, %c0_90] : memref<64x128xf32, #tpu.memory_space<vmem>>, vector<8x128xf32>
    %cst_91 = arith.constant dense<0.000000e+00> : vector<8x128xf32>
    %337 = tpu.matmul %332, %191, %cst_91 {dimension_numbers = #tpu.dot_dimension_numbers<[1], [0], [0], [1], [0, 0, 1, 1], [], []>} : vector<8x32xf32>, vector<32x128xf32>, vector<8x128xf32> -> vector<8x128xf32>
    %338 = arith.addf %337, %336 : vector<8x128xf32>
    %339 = arith.mulf %338, %8 : vector<8x128xf32>
    %340 = math.tanh %339 : vector<8x128xf32>
    %341 = arith.mulf %340, %8 : vector<8x128xf32>
    %342 = arith.addf %341, %11 : vector<8x128xf32>
    %343 = vector.extract_strided_slice %342 {offsets = [0, 0], sizes = [8, 32], strides = [1, 1]} : vector<8x128xf32> to vector<8x32xf32>
    %344 = vector.extract_strided_slice %342 {offsets = [0, 32], sizes = [8, 32], strides = [1, 1]} : vector<8x128xf32> to vector<8x32xf32>
    %345 = vector.extract_strided_slice %342 {offsets = [0, 64], sizes = [8, 32], strides = [1, 1]} : vector<8x128xf32> to vector<8x32xf32>
    %346 = vector.extract_strided_slice %342 {offsets = [0, 96], sizes = [8, 32], strides = [1, 1]} : vector<8x128xf32> to vector<8x32xf32>
    %347 = arith.mulf %344, %330 : vector<8x32xf32>
    %348 = arith.mulf %343, %345 : vector<8x32xf32>
    %349 = arith.addf %347, %348 : vector<8x32xf32>
    %350 = math.tanh %349 : vector<8x32xf32>
    %351 = arith.mulf %346, %350 : vector<8x32xf32>
    %c8_i32_92 = arith.constant 8 : i32
    %c0_93 = arith.constant 0 : index
    %c0_94 = arith.constant 0 : index
    %352 = vector.load %arg7[%c0_93, %c0_94] : memref<32x128xf32, #tpu.memory_space<vmem>>, vector<32x128xf32>
    %cst_95 = arith.constant dense<0.000000e+00> : vector<8x128xf32>
    %353 = tpu.matmul %351, %352, %cst_95 {dimension_numbers = #tpu.dot_dimension_numbers<[1], [0], [0], [1], [0, 0, 1, 1], [], []>} : vector<8x32xf32>, vector<32x128xf32>, vector<8x128xf32> -> vector<8x128xf32>
    %c0_96 = arith.constant 0 : index
    %c0_97 = arith.constant 0 : index
    %354 = vector.load %arg8[%c0_96, %c0_97] : memref<1x128xf32, #tpu.memory_space<vmem>>, vector<1x128xf32>
    %355 = vector.broadcast %354 : vector<1x128xf32> to vector<8x128xf32>
    %356 = arith.addf %353, %355 : vector<8x128xf32>
    %c0_98 = arith.constant 0 : index
    %c0_99 = arith.constant 0 : index
    %357 = vector.load %arg9[%c0_98, %c0_99] : memref<8x128xf32, #tpu.memory_space<vmem>>, vector<8x128xf32>
    tpu.vector_store %arg9[%c0_98, %c0_99], %356 {strides = array<i32>} : memref<8x128xf32, #tpu.memory_space<vmem>>, vector<8x128xf32>,
    return
  }
}

</mosaic_0001>

<llo_original>
// kernel: tpu_custom_call.1
$region0: #{tpu_custom_call.1}
  #allocation0 [shape = 'u32[]', space=smem, size = 0x4, offset = 0x4, fixed_abs, tag = 'smem constant byte address 0x4 - core index']
  #allocation1 [shape = 'u32[144,128]{1,0:T(1,128)}', space=vmem, size = 0x12000, scoped, tag = 'internal scratch']
  #allocation2 [shape = 'f32[64,128]{1,0:T(8,128)}', space=vmem, size = 0x8000, scoped, tag = 'scratch operand']
  #allocation3 [shape = 'f32[64,32]{1,0:T(8,128)}', space=vmem, size = 0x8000, scoped, tag = 'scratch operand']
  #allocation4 [shape = 'f32[64,32]{1,0:T(8,128)}', space=vmem, size = 0x8000, scoped, tag = 'scratch operand']
  %s0 = inlined_call_operand.vmem [shape: f32[64,16], index: 0, kind: input, shape index: {}]
  %s1 = inlined_call_operand.hbm [shape: f32[16,128], index: 1, kind: input, shape index: {}]
  %s2 = inlined_call_operand.vmem [shape: f32[32,128], index: 2, kind: input, shape index: {}]
  %s3 = inlined_call_operand.vmem [shape: f32[1,128], index: 3, kind: input, shape index: {}]
  %s4 = inlined_call_operand.vmem [shape: f32[32,128], index: 4, kind: input, shape index: {}]
  %s5 = inlined_call_operand.vmem [shape: f32[32,128], index: 5, kind: input, shape index: {}]
  %s6 = inlined_call_operand.vmem [shape: f32[1,128], index: 6, kind: input, shape index: {}]
  %s7 = inlined_call_operand.hbm [shape: f32[32,128], index: 7, kind: input, shape index: {}]
  %s8 = inlined_call_operand.vmem [shape: f32[1,128], index: 8, kind: input, shape index: {}]
  %s9 = inlined_call_operand.hbm [shape: f32[8,128], index: 9, kind: output, shape index: {}]
  %s10 = sld [smem:[#allocation0]]
  $region54: #{tpu_custom_call.1} parent=0
    _
  %s12 = ssub.s32 1, %s10
  %s13 = scalar_select 0, %s12, %s10
  $region1: #{tpu_custom_call.1} parent=0
    #allocation5 [shape = 'u8[8192]{0}', space=vmem, size = 0x2000, scoped, tag = 'input window, operand 1, single buffered']
    #allocation6 [shape = 's32[1]{0}', space=sflag, size = 0x4, scoped, tag = 'scoped memory for tpu_custom_call.1']
    #allocation7 [shape = 's32[1]{0}', space=sflag, size = 0x4, scoped, tag = 'scoped memory for tpu_custom_call.1']
    #allocation8 [shape = 'u8[16384]{0}', space=vmem, size = 0x4000, scoped, tag = 'input window, operand 7, single buffered']
    #allocation9 [shape = 's32[1]{0}', space=sflag, size = 0x4, scoped, tag = 'scoped memory for tpu_custom_call.1']
    #allocation10 [shape = 'u8[4096]{0}', space=vmem, size = 0x1000, scoped, tag = 'output window, operand 0, single buffered']
    %14 = vsyncpa [#allocation6], 0
    %15 = vsyncpa [#allocation9], 0
    %16 = vsyncpa [#allocation7], 0
    // Predicated region
    $region2: #{tpu_custom_call.1} parent=1 // pred_check
      _
    $region3: #{tpu_custom_call.1} parent=1 // pred_check_branch
      %18 = sbr.rel (0) target = $region5
    $region4: #{tpu_custom_call.1} parent=1 // pred_region
      _
    $region5: #{tpu_custom_call.1} parent=1 // pred_fallthru
      _
    // Predicated region
    $region6: #{tpu_custom_call.1} parent=1 // pred_check
      _
    $region7: #{tpu_custom_call.1} parent=1 // pred_check_branch
      %20 = sbr.rel (0) target = $region9
    $region8: #{tpu_custom_call.1} parent=1 // pred_region
      %s22 = ssub.s32 256, 256
      %23 = vsyncadd [#allocation6], %s22
      %s24 = sshll.u32 [#allocation5], 4
      %s25 = int_to_ptr.vmem [resolvable:$true] %s24
      %30 = dma.hbm_to_vmem [thread:$0]  %s1, 256, %s25, [#allocation6], 128, 128, 8
    $region9: #{tpu_custom_call.1} parent=1 // pred_fallthru
      _
    // Predicated region
    $region10: #{tpu_custom_call.1} parent=1 // pred_check
      _
    $region11: #{tpu_custom_call.1} parent=1 // pred_check_branch
      %32 = sbr.rel (0) target = $region13
    $region12: #{tpu_custom_call.1} parent=1 // pred_region
      _
    $region13: #{tpu_custom_call.1} parent=1 // pred_fallthru
      _
    // Predicated region
    $region14: #{tpu_custom_call.1} parent=1 // pred_check
      _
    $region15: #{tpu_custom_call.1} parent=1 // pred_check_branch
      %34 = sbr.rel (0) target = $region17
    $region16: #{tpu_custom_call.1} parent=1 // pred_region
      _
    $region17: #{tpu_custom_call.1} parent=1 // pred_fallthru
      _
    // Predicated region
    $region18: #{tpu_custom_call.1} parent=1 // pred_check
      _
    $region19: #{tpu_custom_call.1} parent=1 // pred_check_branch
      %36 = sbr.rel (0) target = $region21
    $region20: #{tpu_custom_call.1} parent=1 // pred_region
      _
    $region21: #{tpu_custom_call.1} parent=1 // pred_fallthru
      _
    // Predicated region
    $region22: #{tpu_custom_call.1} parent=1 // pred_check
      _
    $region23: #{tpu_custom_call.1} parent=1 // pred_check_branch
      %38 = sbr.rel (0) target = $region25
    $region24: #{tpu_custom_call.1} parent=1 // pred_region
      _
    $region25: #{tpu_custom_call.1} parent=1 // pred_fallthru
      _
    // Predicated region
    $region26: #{tpu_custom_call.1} parent=1 // pred_check
      _
    $region27: #{tpu_custom_call.1} parent=1 // pred_check_branch
      %40 = sbr.rel (0) target = $region29
    $region28: #{tpu_custom_call.1} parent=1 // pred_region
      _
    $region29: #{tpu_custom_call.1} parent=1 // pred_fallthru
      _
    // Predicated region
    $region30: #{tpu_custom_call.1} parent=1 // pred_check
      _
    $region31: #{tpu_custom_call.1} parent=1 // pred_check_branch
      %42 = sbr.rel (0) target = $region33
    $region32: #{tpu_custom_call.1} parent=1 // pred_region
      %s44 = ssub.s32 512, 512
      %45 = vsyncadd [#allocation9], %s44
      %s46 = sshll.u32 [#allocation8], 4
      %s47 = int_to_ptr.vmem [resolvable:$true] %s46
      %52 = dma.hbm_to_vmem [thread:$0]  %s7, 512, %s47, [#allocation9], 128, 128, 8
    $region33: #{tpu_custom_call.1} parent=1 // pred_fallthru
      _
    // Predicated region
    $region34: #{tpu_custom_call.1} parent=1 // pred_check
      _
    $region35: #{tpu_custom_call.1} parent=1 // pred_check_branch
      %54 = sbr.rel (0) target = $region37
    $region36: #{tpu_custom_call.1} parent=1 // pred_region
      _
    $region37: #{tpu_custom_call.1} parent=1 // pred_fallthru
      _
    // Predicated region
    $region38: #{tpu_custom_call.1} parent=1 // pred_check
      _
    $region39: #{tpu_custom_call.1} parent=1 // pred_check_branch
      %56 = sbr.rel (0) target = $region41
    $region40: #{tpu_custom_call.1} parent=1 // pred_region
      %57 = dma.done [#allocation6], 256
    $region41: #{tpu_custom_call.1} parent=1 // pred_fallthru
      _
    // Predicated region
    $region42: #{tpu_custom_call.1} parent=1 // pred_check
      _
    $region43: #{tpu_custom_call.1} parent=1 // pred_check_branch
      %59 = sbr.rel (0) target = $region45
    $region44: #{tpu_custom_call.1} parent=1 // pred_region
      %60 = dma.done [#allocation9], 512
    $region45: #{tpu_custom_call.1} parent=1 // pred_fallthru
      _
    %v61 = vlaneseq
    %v62 = vand.u32 %v61, 127
    %vm63 = vcmp.ge.s32.totalorder %v62, 64
    %vm64 = vcmp.lt.s32.totalorder %v62, 96
    %vm65 = vmand %vm63, %vm64
    %v66 = vsel %vm65, 1.0, 0.5
    %v67 = vsel %vm65, 0.0, 0.5
    %v68 = vld [vmem:[#allocation5] sm:$0xff]
    %v69 = vld [vmem:[#allocation5 + $0x8] sm:$0xff]
    %v70 = vld [vmem:[%s2] sm:$0xff]
    %v71 = vld [vmem:[%s2 + $0x8] sm:$0xff]
    %v72 = vld [vmem:[%s2 + $0x10] sm:$0xff]
    %v73 = vld [vmem:[%s2 + $0x18] sm:$0xff]
    %v74 = vld [vmem:[%s3] sm:$0x1]
    %v75 = vld [vmem:[%s0] sm:$0xff]
    %v76 = vld [vmem:[%s0 + $0x8] sm:$0xff]
    %v77 = vld [vmem:[%s0 + $0x10] sm:$0xff]
    %v78 = vld [vmem:[%s0 + $0x18] sm:$0xff]
    %v79 = vld [vmem:[%s0 + $0x20] sm:$0xff]
    %v80 = vld [vmem:[%s0 + $0x28] sm:$0xff]
    %v81 = vld [vmem:[%s0 + $0x30] sm:$0xff]
    %v82 = vld [vmem:[%s0 + $0x38] sm:$0xff]
    %v84 = vlaneseq
    %v85 = vshrl.u32 %v84, 7
    %v86 = vsub.s32 0, %v85
    %v87 = vrot.slane %v74, %v86
    %vm89 = vcmask 130048
    %v91 = vsel %vm89, %v75, 0
    %v94 = vsel %vm89, %v76, 0
    %v97 = vsel %vm89, %v77, 0
    %v100 = vsel %vm89, %v78, 0
    %v103 = vsel %vm89, %v79, 0
    %v106 = vsel %vm89, %v80, 0
    %v109 = vsel %vm89, %v81, 0
    %v112 = vsel %vm89, %v82, 0
    %114 = vmatprep.subr.mxu0 0.0
    %115 = vmatpush1.msra.mxu0 %v68
    %116 = vmatprep.subr.mxu0 0.0
    %117 = vmatpush1.msra.mxu0 %v69
    %118 = vmatprep.subr.mxu0 0.0
    %119 = vmatpush1.msra.mxu0 0.0
    %120 = vmatprep.subr.mxu0 0.0
    %121 = vmatpush1.msra.mxu0 0.0
    %122 = vmatprep.subr.mxu0 0.0
    %123 = vmatpush1.msra.mxu0 0.0
    %124 = vmatprep.subr.mxu0 0.0
    %125 = vmatpush1.msra.mxu0 0.0
    %126 = vmatprep.subr.mxu0 0.0
    %127 = vmatpush1.msra.mxu0 0.0
    %128 = vmatprep.subr.mxu0 0.0
    %129 = vmatpush1.msra.mxu0 0.0
    %130 = vmatprep.subr.mxu0 0.0
    %131 = vmatpush1.msra.mxu0 0.0
    %132 = vmatprep.subr.mxu0 0.0
    %133 = vmatpush1.msra.mxu0 0.0
    %134 = vmatprep.subr.mxu0 0.0
    %135 = vmatpush1.msra.mxu0 0.0
    %136 = vmatprep.subr.mxu0 0.0
    %137 = vmatpush1.msra.mxu0 0.0
    %138 = vmatprep.subr.mxu0 0.0
    %139 = vmatpush1.msra.mxu0 0.0
    %140 = vmatprep.subr.mxu0 0.0
    %141 = vmatpush1.msra.mxu0 0.0
    %142 = vmatprep.subr.mxu0 0.0
    %143 = vmatpush1.msra.mxu0 0.0
    %144 = vmatprep.subr.mxu0 0.0
    %145 = vmatpush1.msra.mxu0 0.0
    %146 = vmatprep.subr.mxu0 0.0
    %147 = vmatpush1.msra.mxu0 0.0
    %148 = vmatprep.subr.mxu0 0.0
    %149 = vmatpush1.msra.mxu0 0.0
    %150 = vmatprep.subr.mxu0 0.0
    %151 = vmatpush1.msra.mxu0 0.0
    %152 = vmatprep.subr.mxu0 0.0
    %153 = vmatpush1.msra.mxu0 0.0
    %154 = vmatprep.subr.mxu0 0.0
    %155 = vmatpush1.msra.mxu0 0.0
    %156 = vmatprep.subr.mxu0 0.0
    %157 = vmatpush1.msra.mxu0 0.0
    %158 = vmatprep.subr.mxu0 0.0
    %159 = vmatpush1.msra.mxu0 0.0
    %160 = vmatprep.subr.mxu0 0.0
    %161 = vmatpush1.msra.mxu0 0.0
    %162 = vmatprep.subr.mxu0 0.0
    %163 = vmatpush1.msra.mxu0 0.0
    %164 = vmatprep.subr.mxu0 0.0
    %165 = vmatpush1.msra.mxu0 0.0
    %166 = vmatprep.subr.mxu0 0.0
    %167 = vmatpush1.msra.mxu0 0.0
    %168 = vmatprep.subr.mxu0 0.0
    %169 = vmatpush1.msra.mxu0 0.0
    %170 = vmatprep.subr.mxu0 0.0
    %171 = vmatpush1.msra.mxu0 0.0
    %172 = vmatprep.subr.mxu0 0.0
    %173 = vmatpush1.msra.mxu0 0.0
    %174 = vmatprep.subr.mxu0 0.0
    %175 = vmatpush1.msra.mxu0 0.0
    %176 = vmatprep.subr.mxu0 0.0
    %177 = vmatpush1.msra.mxu0 0.0
    %178 = vmatprep.mubr.f32.mxu0 0.0
    %179 = vmatmul.mubr.f32.gmra.mrb[0].mxu0 %v91
    %v180 = vpop.f32.mrb[0].mxu0
    %v181 = vadd.f32 %v87, %v180
    %v182 = vpop.f32.mrb[0].mxu0
    %183 = vmatprep.mubr.f32.mxu0 0.0
    %184 = vmatmul.mubr.f32.gmra.mrb[0].mxu0 %v94
    %v185 = vpop.f32.mrb[0].mxu0
    %v186 = vadd.f32 %v87, %v185
    %v187 = vpop.f32.mrb[0].mxu0
    %188 = vmatprep.mubr.f32.mxu0 0.0
    %189 = vmatmul.mubr.f32.gmra.mrb[0].mxu0 %v97
    %v190 = vpop.f32.mrb[0].mxu0
    %v191 = vadd.f32 %v87, %v190
    %v192 = vpop.f32.mrb[0].mxu0
    %193 = vmatprep.mubr.f32.mxu0 0.0
    %194 = vmatmul.mubr.f32.gmra.mrb[0].mxu0 %v100
    %v195 = vpop.f32.mrb[0].mxu0
    %v196 = vadd.f32 %v87, %v195
    %v197 = vpop.f32.mrb[0].mxu0
    %198 = vmatprep.mubr.f32.mxu0 0.0
    %199 = vmatmul.mubr.f32.gmra.mrb[0].mxu0 %v103
    %v200 = vpop.f32.mrb[0].mxu0
    %v201 = vadd.f32 %v87, %v200
    %v202 = vpop.f32.mrb[0].mxu0
    %203 = vmatprep.mubr.f32.mxu0 0.0
    %204 = vmatmul.mubr.f32.gmra.mrb[0].mxu0 %v106
    %v205 = vpop.f32.mrb[0].mxu0
    %v206 = vadd.f32 %v87, %v205
    %v207 = vpop.f32.mrb[0].mxu0
    %208 = vmatprep.mubr.f32.mxu0 0.0
    %209 = vmatmul.mubr.f32.gmra.mrb[0].mxu0 %v109
    %v210 = vpop.f32.mrb[0].mxu0
    %v211 = vadd.f32 %v87, %v210
    %v212 = vpop.f32.mrb[0].mxu0
    %213 = vmatprep.mubr.f32.mxu0 0.0
    %214 = vmatmul.mubr.f32.gmra.mrb[0].mxu0 %v112
    %v215 = vpop.f32.mrb[0].mxu0
    %v216 = vadd.f32 %v87, %v215
    %v217 = vpop.f32.mrb[0].mxu0
    %218 = vdwg.mxu0
    %219 = vst [vmem:[#allocation2] sm:$0xff] %v181
    %220 = vst [vmem:[#allocation2 + $0x8] sm:$0xff] %v186
    %221 = vst [vmem:[#allocation2 + $0x10] sm:$0xff] %v191
    %222 = vst [vmem:[#allocation2 + $0x18] sm:$0xff] %v196
    %223 = vst [vmem:[#allocation2 + $0x20] sm:$0xff] %v201
    %224 = vst [vmem:[#allocation2 + $0x28] sm:$0xff] %v206
    %225 = vst [vmem:[#allocation2 + $0x30] sm:$0xff] %v211
    %226 = vst [vmem:[#allocation2 + $0x38] sm:$0xff] %v216
    %v227 = vld [vmem:[#allocation2] sm:$0xff]
    %vm228 = vcmask 261120
    %v230 = vsel %vm228, 0.0, 0
    %232 = vmatprep.subr.mxu0 0.0
    %233 = vmatpush1.msra.mxu0 %v70
    %234 = vmatprep.subr.mxu0 0.0
    %235 = vmatpush1.msra.mxu0 %v71
    %236 = vmatprep.subr.mxu0 0.0
    %237 = vmatpush1.msra.mxu0 %v72
    %238 = vmatprep.subr.mxu0 0.0
    %239 = vmatpush1.msra.mxu0 %v73
    %240 = vmatprep.subr.mxu0 0.0
    %241 = vmatpush1.msra.mxu0 0.0
    %242 = vmatprep.subr.mxu0 0.0
    %243 = vmatpush1.msra.mxu0 0.0
    %244 = vmatprep.subr.mxu0 0.0
    %245 = vmatpush1.msra.mxu0 0.0
    %246 = vmatprep.subr.mxu0 0.0
    %247 = vmatpush1.msra.mxu0 0.0
    %248 = vmatprep.subr.mxu0 0.0
    %249 = vmatpush1.msra.mxu0 0.0
    %250 = vmatprep.subr.mxu0 0.0
    %251 = vmatpush1.msra.mxu0 0.0
    %252 = vmatprep.subr.mxu0 0.0
    %253 = vmatpush1.msra.mxu0 0.0
    %254 = vmatprep.subr.mxu0 0.0
    %255 = vmatpush1.msra.mxu0 0.0
    %256 = vmatprep.subr.mxu0 0.0
    %257 = vmatpush1.msra.mxu0 0.0
    %258 = vmatprep.subr.mxu0 0.0
    %259 = vmatpush1.msra.mxu0 0.0
    %260 = vmatprep.subr.mxu0 0.0
    %261 = vmatpush1.msra.mxu0 0.0
    %262 = vmatprep.subr.mxu0 0.0
    %263 = vmatpush1.msra.mxu0 0.0
    %264 = vmatprep.subr.mxu0 0.0
    %265 = vmatpush1.msra.mxu0 0.0
    %266 = vmatprep.subr.mxu0 0.0
    %267 = vmatpush1.msra.mxu0 0.0
    %268 = vmatprep.subr.mxu0 0.0
    %269 = vmatpush1.msra.mxu0 0.0
    %270 = vmatprep.subr.mxu0 0.0
    %271 = vmatpush1.msra.mxu0 0.0
    %272 = vmatprep.subr.mxu0 0.0
    %273 = vmatpush1.msra.mxu0 0.0
    %274 = vmatprep.subr.mxu0 0.0
    %275 = vmatpush1.msra.mxu0 0.0
    %276 = vmatprep.subr.mxu0 0.0
    %277 = vmatpush1.msra.mxu0 0.0
    %278 = vmatprep.subr.mxu0 0.0
    %279 = vmatpush1.msra.mxu0 0.0
    %280 = vmatprep.subr.mxu0 0.0
    %281 = vmatpush1.msra.mxu0 0.0
    %282 = vmatprep.subr.mxu0 0.0
    %283 = vmatpush1.msra.mxu0 0.0
    %284 = vmatprep.subr.mxu0 0.0
    %285 = vmatpush1.msra.mxu0 0.0
    %286 = vmatprep.subr.mxu0 0.0
    %287 = vmatpush1.msra.mxu0 0.0
    %288 = vmatprep.subr.mxu0 0.0
    %289 = vmatpush1.msra.mxu0 0.0
    %290 = vmatprep.subr.mxu0 0.0
    %291 = vmatpush1.msra.mxu0 0.0
    %292 = vmatprep.subr.mxu0 0.0
    %293 = vmatpush1.msra.mxu0 0.0
    %294 = vmatprep.subr.mxu0 0.0
    %295 = vmatpush1.msra.mxu0 0.0
    %296 = vmatprep.mubr.f32.mxu0 0.0
    %297 = vmatmul.mubr.f32.gmra.mrb[0].mxu0 %v230
    %v298 = vpop.f32.mrb[0].mxu0
    %v299 = vadd.f32 %v227, %v298
    %v300 = vpop.f32.mrb[0].mxu0
    %301 = vdwg.mxu0
    %v302 = vmul.f32 %v299, %v66
    %v303 = vtanh.pop %v302
    %v304 = vmul.f32 %v303, %v66
    %v305 = vadd.f32 %v304, %v67
    %v306 = vmul.f32 %v305, 0.0
    %308 = vrot.lane.b32.xlu0 %v305, 64
    %v309 = vpop.permute.xlu0 %308
    %v311 = vmul.f32 %v305, %v309
    %313 = vrot.lane.b32.xlu0 %v311, 32
    %v314 = vpop.permute.xlu0 %313
    %v316 = vadd.f32 %v306, %v314
    %v317 = vtanh.pop %v316
    %319 = vrot.lane.b32.xlu0 %v317, 64
    %v320 = vpop.permute.xlu0 %319
    %v322 = vmul.f32 %v305, %v320
    %324 = vrot.lane.b32.xlu0 %v322, 32
    %v325 = vpop.permute.xlu0 %324
    %327 = vst.msk [vmem:[#allocation3] sm:$0xff] %vm228, %v325
    %s328 = scalar_lea.vmem [#allocation2], 8
    %v329 = vld [vmem:[%s328] sm:$0xff]
    %v330 = vsel %vm228, %v325, 0
    %332 = vmatprep.subr.mxu0 0.0
    %333 = vmatpush1.msra.mxu0 %v70
    %334 = vmatprep.subr.mxu0 0.0
    %335 = vmatpush1.msra.mxu0 %v71
    %336 = vmatprep.subr.mxu0 0.0
    %337 = vmatpush1.msra.mxu0 %v72
    %338 = vmatprep.subr.mxu0 0.0
    %339 = vmatpush1.msra.mxu0 %v73
    %340 = vmatprep.subr.mxu0 0.0
    %341 = vmatpush1.msra.mxu0 0.0
    %342 = vmatprep.subr.mxu0 0.0
    %343 = vmatpush1.msra.mxu0 0.0
    %344 = vmatprep.subr.mxu0 0.0
    %345 = vmatpush1.msra.mxu0 0.0
    %346 = vmatprep.subr.mxu0 0.0
    %347 = vmatpush1.msra.mxu0 0.0
    %348 = vmatprep.subr.mxu0 0.0
    %349 = vmatpush1.msra.mxu0 0.0
    %350 = vmatprep.subr.mxu0 0.0
    %351 = vmatpush1.msra.mxu0 0.0
    %352 = vmatprep.subr.mxu0 0.0
    %353 = vmatpush1.msra.mxu0 0.0
    %354 = vmatprep.subr.mxu0 0.0
    %355 = vmatpush1.msra.mxu0 0.0
    %356 = vmatprep.subr.mxu0 0.0
    %357 = vmatpush1.msra.mxu0 0.0
    %358 = vmatprep.subr.mxu0 0.0
    %359 = vmatpush1.msra.mxu0 0.0
    %360 = vmatprep.subr.mxu0 0.0
    %361 = vmatpush1.msra.mxu0 0.0
    %362 = vmatprep.subr.mxu0 0.0
    %363 = vmatpush1.msra.mxu0 0.0
    %364 = vmatprep.subr.mxu0 0.0
    %365 = vmatpush1.msra.mxu0 0.0
    %366 = vmatprep.subr.mxu0 0.0
    %367 = vmatpush1.msra.mxu0 0.0
    %368 = vmatprep.subr.mxu0 0.0
    %369 = vmatpush1.msra.mxu0 0.0
    %370 = vmatprep.subr.mxu0 0.0
    %371 = vmatpush1.msra.mxu0 0.0
    %372 = vmatprep.subr.mxu0 0.0
    %373 = vmatpush1.msra.mxu0 0.0
    %374 = vmatprep.subr.mxu0 0.0
    %375 = vmatpush1.msra.mxu0 0.0
    %376 = vmatprep.subr.mxu0 0.0
    %377 = vmatpush1.msra.mxu0 0.0
    %378 = vmatprep.subr.mxu0 0.0
    %379 = vmatpush1.msra.mxu0 0.0
    %380 = vmatprep.subr.mxu0 0.0
    %381 = vmatpush1.msra.mxu0 0.0
    %382 = vmatprep.subr.mxu0 0.0
    %383 = vmatpush1.msra.mxu0 0.0
    %384 = vmatprep.subr.mxu0 0.0
    %385 = vmatpush1.msra.mxu0 0.0
    %386 = vmatprep.subr.mxu0 0.0
    %387 = vmatpush1.msra.mxu0 0.0
    %388 = vmatprep.subr.mxu0 0.0
    %389 = vmatpush1.msra.mxu0 0.0
    %390 = vmatprep.subr.mxu0 0.0
    %391 = vmatpush1.msra.mxu0 0.0
    %392 = vmatprep.subr.mxu0 0.0
    %393 = vmatpush1.msra.mxu0 0.0
    %394 = vmatprep.subr.mxu0 0.0
    %395 = vmatpush1.msra.mxu0 0.0
    %396 = vmatprep.mubr.f32.mxu0 0.0
    %397 = vmatmul.mubr.f32.gmra.mrb[0].mxu0 %v330
    %v398 = vpop.f32.mrb[0].mxu0
    %v399 = vadd.f32 %v329, %v398
    %v400 = vpop.f32.mrb[0].mxu0
    %401 = vdwg.mxu0
    %v402 = vmul.f32 %v399, %v66
    %v403 = vtanh.pop %v402
    %v404 = vmul.f32 %v403, %v66
    %v405 = vadd.f32 %v404, %v67
    %v406 = vmul.f32 %v405, %v316
    %408 = vrot.lane.b32.xlu0 %v405, 64
    %v409 = vpop.permute.xlu0 %408
    %v411 = vmul.f32 %v405, %v409
    %413 = vrot.lane.b32.xlu0 %v411, 32
    %v414 = vpop.permute.xlu0 %413
    %v416 = vadd.f32 %v406, %v414
    %v417 = vtanh.pop %v416
    %419 = vrot.lane.b32.xlu0 %v417, 64
    %v420 = vpop.permute.xlu0 %419
    %v422 = vmul.f32 %v405, %v420
    %424 = vrot.lane.b32.xlu0 %v422, 32
    %v425 = vpop.permute.xlu0 %424
    %s427 = scalar_lea.vmem [#allocation3], 8
    %428 = vst.msk [vmem:[%s427] sm:$0xff] %vm228, %v425
    %s429 = scalar_lea.vmem [#allocation2], 16
    %v430 = vld [vmem:[%s429] sm:$0xff]
    %v431 = vsel %vm228, %v425, 0
    %433 = vmatprep.subr.mxu0 0.0
    %434 = vmatpush1.msra.mxu0 %v70
    %435 = vmatprep.subr.mxu0 0.0
    %436 = vmatpush1.msra.mxu0 %v71
    %437 = vmatprep.subr.mxu0 0.0
    %438 = vmatpush1.msra.mxu0 %v72
    %439 = vmatprep.subr.mxu0 0.0
    %440 = vmatpush1.msra.mxu0 %v73
    %441 = vmatprep.subr.mxu0 0.0
    %442 = vmatpush1.msra.mxu0 0.0
    %443 = vmatprep.subr.mxu0 0.0
    %444 = vmatpush1.msra.mxu0 0.0
    %445 = vmatprep.subr.mxu0 0.0
    %446 = vmatpush1.msra.mxu0 0.0
    %447 = vmatprep.subr.mxu0 0.0
    %448 = vmatpush1.msra.mxu0 0.0
    %449 = vmatprep.subr.mxu0 0.0
    %450 = vmatpush1.msra.mxu0 0.0
    %451 = vmatprep.subr.mxu0 0.0
    %452 = vmatpush1.msra.mxu0 0.0
    %453 = vmatprep.subr.mxu0 0.0
    %454 = vmatpush1.msra.mxu0 0.0
    %455 = vmatprep.subr.mxu0 0.0
    %456 = vmatpush1.msra.mxu0 0.0
    %457 = vmatprep.subr.mxu0 0.0
    %458 = vmatpush1.msra.mxu0 0.0
    %459 = vmatprep.subr.mxu0 0.0
    %460 = vmatpush1.msra.mxu0 0.0
    %461 = vmatprep.subr.mxu0 0.0
    %462 = vmatpush1.msra.mxu0 0.0
    %463 = vmatprep.subr.mxu0 0.0
    %464 = vmatpush1.msra.mxu0 0.0
    %465 = vmatprep.subr.mxu0 0.0
    %466 = vmatpush1.msra.mxu0 0.0
    %467 = vmatprep.subr.mxu0 0.0
    %468 = vmatpush1.msra.mxu0 0.0
    %469 = vmatprep.subr.mxu0 0.0
    %470 = vmatpush1.msra.mxu0 0.0
    %471 = vmatprep.subr.mxu0 0.0
    %472 = vmatpush1.msra.mxu0 0.0
    %473 = vmatprep.subr.mxu0 0.0
    %474 = vmatpush1.msra.mxu0 0.0
    %475 = vmatprep.subr.mxu0 0.0
    %476 = vmatpush1.msra.mxu0 0.0
    %477 = vmatprep.subr.mxu0 0.0
    %478 = vmatpush1.msra.mxu0 0.0
    %479 = vmatprep.subr.mxu0 0.0
    %480 = vmatpush1.msra.mxu0 0.0
    %481 = vmatprep.subr.mxu0 0.0
    %482 = vmatpush1.msra.mxu0 0.0
    %483 = vmatprep.subr.mxu0 0.0
    %484 = vmatpush1.msra.mxu0 0.0
    %485 = vmatprep.subr.mxu0 0.0
    %486 = vmatpush1.msra.mxu0 0.0
    %487 = vmatprep.subr.mxu0 0.0
    %488 = vmatpush1.msra.mxu0 0.0
    %489 = vmatprep.subr.mxu0 0.0
    %490 = vmatpush1.msra.mxu0 0.0
    %491 = vmatprep.subr.mxu0 0.0
    %492 = vmatpush1.msra.mxu0 0.0
    %493 = vmatprep.subr.mxu0 0.0
    %494 = vmatpush1.msra.mxu0 0.0
    %495 = vmatprep.subr.mxu0 0.0
    %496 = vmatpush1.msra.mxu0 0.0
    %497 = vmatprep.mubr.f32.mxu0 0.0
    %498 = vmatmul.mubr.f32.gmra.mrb[0].mxu0 %v431
    %v499 = vpop.f32.mrb[0].mxu0
    %v500 = vadd.f32 %v430, %v499
    %v501 = vpop.f32.mrb[0].mxu0
    %502 = vdwg.mxu0
    %v503 = vmul.f32 %v500, %v66
    %v504 = vtanh.pop %v503
    %v505 = vmul.f32 %v504, %v66
    %v506 = vadd.f32 %v505, %v67
    %v507 = vmul.f32 %v506, %v416
    %509 = vrot.lane.b32.xlu0 %v506, 64
    %v510 = vpop.permute.xlu0 %509
    %v512 = vmul.f32 %v506, %v510
    %514 = vrot.lane.b32.xlu0 %v512, 32
    %v515 = vpop.permute.xlu0 %514
    %v517 = vadd.f32 %v507, %v515
    %v518 = vtanh.pop %v517
    %520 = vrot.lane.b32.xlu0 %v518, 64
    %v521 = vpop.permute.xlu0 %520
    %v523 = vmul.f32 %v506, %v521
    %525 = vrot.lane.b32.xlu0 %v523, 32
    %v526 = vpop.permute.xlu0 %525
    %s528 = scalar_lea.vmem [#allocation3], 16
    %529 = vst.msk [vmem:[%s528] sm:$0xff] %vm228, %v526
    %s530 = scalar_lea.vmem [#allocation2], 24
    %v531 = vld [vmem:[%s530] sm:$0xff]
    %v532 = vsel %vm228, %v526, 0
    %534 = vmatprep.subr.mxu0 0.0
    %535 = vmatpush1.msra.mxu0 %v70
    %536 = vmatprep.subr.mxu0 0.0
    %537 = vmatpush1.msra.mxu0 %v71
    %538 = vmatprep.subr.mxu0 0.0
    %539 = vmatpush1.msra.mxu0 %v72
    %540 = vmatprep.subr.mxu0 0.0
    %541 = vmatpush1.msra.mxu0 %v73
    %542 = vmatprep.subr.mxu0 0.0
    %543 = vmatpush1.msra.mxu0 0.0
    %544 = vmatprep.subr.mxu0 0.0
    %545 = vmatpush1.msra.mxu0 0.0
    %546 = vmatprep.subr.mxu0 0.0
    %547 = vmatpush1.msra.mxu0 0.0
    %548 = vmatprep.subr.mxu0 0.0
    %549 = vmatpush1.msra.mxu0 0.0
    %550 = vmatprep.subr.mxu0 0.0
    %551 = vmatpush1.msra.mxu0 0.0
    %552 = vmatprep.subr.mxu0 0.0
    %553 = vmatpush1.msra.mxu0 0.0
    %554 = vmatprep.subr.mxu0 0.0
    %555 = vmatpush1.msra.mxu0 0.0
    %556 = vmatprep.subr.mxu0 0.0
    %557 = vmatpush1.msra.mxu0 0.0
    %558 = vmatprep.subr.mxu0 0.0
    %559 = vmatpush1.msra.mxu0 0.0
    %560 = vmatprep.subr.mxu0 0.0
    %561 = vmatpush1.msra.mxu0 0.0
    %562 = vmatprep.subr.mxu0 0.0
    %563 = vmatpush1.msra.mxu0 0.0
    %564 = vmatprep.subr.mxu0 0.0
    %565 = vmatpush1.msra.mxu0 0.0
    %566 = vmatprep.subr.mxu0 0.0
    %567 = vmatpush1.msra.mxu0 0.0
    %568 = vmatprep.subr.mxu0 0.0
    %569 = vmatpush1.msra.mxu0 0.0
    %570 = vmatprep.subr.mxu0 0.0
    %571 = vmatpush1.msra.mxu0 0.0
    %572 = vmatprep.subr.mxu0 0.0
    %573 = vmatpush1.msra.mxu0 0.0
    %574 = vmatprep.subr.mxu0 0.0
    %575 = vmatpush1.msra.mxu0 0.0
    %576 = vmatprep.subr.mxu0 0.0
    %577 = vmatpush1.msra.mxu0 0.0
    %578 = vmatprep.subr.mxu0 0.0
    %579 = vmatpush1.msra.mxu0 0.0
    %580 = vmatprep.subr.mxu0 0.0
    %581 = vmatpush1.msra.mxu0 0.0
    %582 = vmatprep.subr.mxu0 0.0
    %583 = vmatpush1.msra.mxu0 0.0
    %584 = vmatprep.subr.mxu0 0.0
    %585 = vmatpush1.msra.mxu0 0.0
    %586 = vmatprep.subr.mxu0 0.0
    %587 = vmatpush1.msra.mxu0 0.0
    %588 = vmatprep.subr.mxu0 0.0
    %589 = vmatpush1.msra.mxu0 0.0
    %590 = vmatprep.subr.mxu0 0.0
    %591 = vmatpush1.msra.mxu0 0.0
    %592 = vmatprep.subr.mxu0 0.0
    %593 = vmatpush1.msra.mxu0 0.0
    %594 = vmatprep.subr.mxu0 0.0
    %595 = vmatpush1.msra.mxu0 0.0
    %596 = vmatprep.subr.mxu0 0.0
    %597 = vmatpush1.msra.mxu0 0.0
    %598 = vmatprep.mubr.f32.mxu0 0.0
    %599 = vmatmul.mubr.f32.gmra.mrb[0].mxu0 %v532
    %v600 = vpop.f32.mrb[0].mxu0
    %v601 = vadd.f32 %v531, %v600
    %v602 = vpop.f32.mrb[0].mxu0
    %603 = vdwg.mxu0
    %v604 = vmul.f32 %v601, %v66
    %v605 = vtanh.pop %v604
    %v606 = vmul.f32 %v605, %v66
    %v607 = vadd.f32 %v606, %v67
    %v608 = vmul.f32 %v607, %v517
    %610 = vrot.lane.b32.xlu0 %v607, 64
    %v611 = vpop.permute.xlu0 %610
    %v613 = vmul.f32 %v607, %v611
    %615 = vrot.lane.b32.xlu0 %v613, 32
    %v616 = vpop.permute.xlu0 %615
    %v618 = vadd.f32 %v608, %v616
    %v619 = vtanh.pop %v618
    %621 = vrot.lane.b32.xlu0 %v619, 64
    %v622 = vpop.permute.xlu0 %621
    %v624 = vmul.f32 %v607, %v622
    %626 = vrot.lane.b32.xlu0 %v624, 32
    %v627 = vpop.permute.xlu0 %626
    %s629 = scalar_lea.vmem [#allocation3], 24
    %630 = vst.msk [vmem:[%s629] sm:$0xff] %vm228, %v627
    %s631 = scalar_lea.vmem [#allocation2], 32
    %v632 = vld [vmem:[%s631] sm:$0xff]
    %v633 = vsel %vm228, %v627, 0
    %635 = vmatprep.subr.mxu0 0.0
    %636 = vmatpush1.msra.mxu0 %v70
    %637 = vmatprep.subr.mxu0 0.0
    %638 = vmatpush1.msra.mxu0 %v71
    %639 = vmatprep.subr.mxu0 0.0
    %640 = vmatpush1.msra.mxu0 %v72
    %641 = vmatprep.subr.mxu0 0.0
    %642 = vmatpush1.msra.mxu0 %v73
    %643 = vmatprep.subr.mxu0 0.0
    %644 = vmatpush1.msra.mxu0 0.0
    %645 = vmatprep.subr.mxu0 0.0
    %646 = vmatpush1.msra.mxu0 0.0
    %647 = vmatprep.subr.mxu0 0.0
    %648 = vmatpush1.msra.mxu0 0.0
    %649 = vmatprep.subr.mxu0 0.0
    %650 = vmatpush1.msra.mxu0 0.0
    %651 = vmatprep.subr.mxu0 0.0
    %652 = vmatpush1.msra.mxu0 0.0
    %653 = vmatprep.subr.mxu0 0.0
    %654 = vmatpush1.msra.mxu0 0.0
    %655 = vmatprep.subr.mxu0 0.0
    %656 = vmatpush1.msra.mxu0 0.0
    %657 = vmatprep.subr.mxu0 0.0
    %658 = vmatpush1.msra.mxu0 0.0
    %659 = vmatprep.subr.mxu0 0.0
    %660 = vmatpush1.msra.mxu0 0.0
    %661 = vmatprep.subr.mxu0 0.0
    %662 = vmatpush1.msra.mxu0 0.0
    %663 = vmatprep.subr.mxu0 0.0
    %664 = vmatpush1.msra.mxu0 0.0
    %665 = vmatprep.subr.mxu0 0.0
    %666 = vmatpush1.msra.mxu0 0.0
    %667 = vmatprep.subr.mxu0 0.0
    %668 = vmatpush1.msra.mxu0 0.0
    %669 = vmatprep.subr.mxu0 0.0
    %670 = vmatpush1.msra.mxu0 0.0
    %671 = vmatprep.subr.mxu0 0.0
    %672 = vmatpush1.msra.mxu0 0.0
    %673 = vmatprep.subr.mxu0 0.0
    %674 = vmatpush1.msra.mxu0 0.0
    %675 = vmatprep.subr.mxu0 0.0
    %676 = vmatpush1.msra.mxu0 0.0
    %677 = vmatprep.subr.mxu0 0.0
    %678 = vmatpush1.msra.mxu0 0.0
    %679 = vmatprep.subr.mxu0 0.0
    %680 = vmatpush1.msra.mxu0 0.0
    %681 = vmatprep.subr.mxu0 0.0
    %682 = vmatpush1.msra.mxu0 0.0
    %683 = vmatprep.subr.mxu0 0.0
    %684 = vmatpush1.msra.mxu0 0.0
    %685 = vmatprep.subr.mxu0 0.0
    %686 = vmatpush1.msra.mxu0 0.0
    %687 = vmatprep.subr.mxu0 0.0
    %688 = vmatpush1.msra.mxu0 0.0
    %689 = vmatprep.subr.mxu0 0.0
    %690 = vmatpush1.msra.mxu0 0.0
    %691 = vmatprep.subr.mxu0 0.0
    %692 = vmatpush1.msra.mxu0 0.0
    %693 = vmatprep.subr.mxu0 0.0
    %694 = vmatpush1.msra.mxu0 0.0
    %695 = vmatprep.subr.mxu0 0.0
    %696 = vmatpush1.msra.mxu0 0.0
    %697 = vmatprep.subr.mxu0 0.0
    %698 = vmatpush1.msra.mxu0 0.0
    %699 = vmatprep.mubr.f32.mxu0 0.0
    %700 = vmatmul.mubr.f32.gmra.mrb[0].mxu0 %v633
    %v701 = vpop.f32.mrb[0].mxu0
    %v702 = vadd.f32 %v632, %v701
    %v703 = vpop.f32.mrb[0].mxu0
    %704 = vdwg.mxu0
    %v705 = vmul.f32 %v702, %v66
    %v706 = vtanh.pop %v705
    %v707 = vmul.f32 %v706, %v66
    %v708 = vadd.f32 %v707, %v67
    %v709 = vmul.f32 %v708, %v618
    %711 = vrot.lane.b32.xlu0 %v708, 64
    %v712 = vpop.permute.xlu0 %711
    %v714 = vmul.f32 %v708, %v712
    %716 = vrot.lane.b32.xlu0 %v714, 32
    %v717 = vpop.permute.xlu0 %716
    %v719 = vadd.f32 %v709, %v717
    %v720 = vtanh.pop %v719
    %722 = vrot.lane.b32.xlu0 %v720, 64
    %v723 = vpop.permute.xlu0 %722
    %v725 = vmul.f32 %v708, %v723
    %727 = vrot.lane.b32.xlu0 %v725, 32
    %v728 = vpop.permute.xlu0 %727
    %s730 = scalar_lea.vmem [#allocation3], 32
    %731 = vst.msk [vmem:[%s730] sm:$0xff] %vm228, %v728
    %s732 = scalar_lea.vmem [#allocation2], 40
    %v733 = vld [vmem:[%s732] sm:$0xff]
    %v734 = vsel %vm228, %v728, 0
    %736 = vmatprep.subr.mxu0 0.0
    %737 = vmatpush1.msra.mxu0 %v70
    %738 = vmatprep.subr.mxu0 0.0
    %739 = vmatpush1.msra.mxu0 %v71
    %740 = vmatprep.subr.mxu0 0.0
    %741 = vmatpush1.msra.mxu0 %v72
    %742 = vmatprep.subr.mxu0 0.0
    %743 = vmatpush1.msra.mxu0 %v73
    %744 = vmatprep.subr.mxu0 0.0
    %745 = vmatpush1.msra.mxu0 0.0
    %746 = vmatprep.subr.mxu0 0.0
    %747 = vmatpush1.msra.mxu0 0.0
    %748 = vmatprep.subr.mxu0 0.0
    %749 = vmatpush1.msra.mxu0 0.0
    %750 = vmatprep.subr.mxu0 0.0
    %751 = vmatpush1.msra.mxu0 0.0
    %752 = vmatprep.subr.mxu0 0.0
    %753 = vmatpush1.msra.mxu0 0.0
    %754 = vmatprep.subr.mxu0 0.0
    %755 = vmatpush1.msra.mxu0 0.0
    %756 = vmatprep.subr.mxu0 0.0
    %757 = vmatpush1.msra.mxu0 0.0
    %758 = vmatprep.subr.mxu0 0.0
    %759 = vmatpush1.msra.mxu0 0.0
    %760 = vmatprep.subr.mxu0 0.0
    %761 = vmatpush1.msra.mxu0 0.0
    %762 = vmatprep.subr.mxu0 0.0
    %763 = vmatpush1.msra.mxu0 0.0
    %764 = vmatprep.subr.mxu0 0.0
    %765 = vmatpush1.msra.mxu0 0.0
    %766 = vmatprep.subr.mxu0 0.0
    %767 = vmatpush1.msra.mxu0 0.0
    %768 = vmatprep.subr.mxu0 0.0
    %769 = vmatpush1.msra.mxu0 0.0
    %770 = vmatprep.subr.mxu0 0.0
    %771 = vmatpush1.msra.mxu0 0.0
    %772 = vmatprep.subr.mxu0 0.0
    %773 = vmatpush1.msra.mxu0 0.0
    %774 = vmatprep.subr.mxu0 0.0
    %775 = vmatpush1.msra.mxu0 0.0
    %776 = vmatprep.subr.mxu0 0.0
    %777 = vmatpush1.msra.mxu0 0.0
    %778 = vmatprep.subr.mxu0 0.0
    %779 = vmatpush1.msra.mxu0 0.0
    %780 = vmatprep.subr.mxu0 0.0
    %781 = vmatpush1.msra.mxu0 0.0
    %782 = vmatprep.subr.mxu0 0.0
    %783 = vmatpush1.msra.mxu0 0.0
    %784 = vmatprep.subr.mxu0 0.0
    %785 = vmatpush1.msra.mxu0 0.0
    %786 = vmatprep.subr.mxu0 0.0
    %787 = vmatpush1.msra.mxu0 0.0
    %788 = vmatprep.subr.mxu0 0.0
    %789 = vmatpush1.msra.mxu0 0.0
    %790 = vmatprep.subr.mxu0 0.0
    %791 = vmatpush1.msra.mxu0 0.0
    %792 = vmatprep.subr.mxu0 0.0
    %793 = vmatpush1.msra.mxu0 0.0
    %794 = vmatprep.subr.mxu0 0.0
    %795 = vmatpush1.msra.mxu0 0.0
    %796 = vmatprep.subr.mxu0 0.0
    %797 = vmatpush1.msra.mxu0 0.0
    %798 = vmatprep.subr.mxu0 0.0
    %799 = vmatpush1.msra.mxu0 0.0
    %800 = vmatprep.mubr.f32.mxu0 0.0
    %801 = vmatmul.mubr.f32.gmra.mrb[0].mxu0 %v734
    %v802 = vpop.f32.mrb[0].mxu0
    %v803 = vadd.f32 %v733, %v802
    %v804 = vpop.f32.mrb[0].mxu0
    %805 = vdwg.mxu0
    %v806 = vmul.f32 %v803, %v66
    %v807 = vtanh.pop %v806
    %v808 = vmul.f32 %v807, %v66
    %v809 = vadd.f32 %v808, %v67
    %v810 = vmul.f32 %v809, %v719
    %812 = vrot.lane.b32.xlu0 %v809, 64
    %v813 = vpop.permute.xlu0 %812
    %v815 = vmul.f32 %v809, %v813
    %817 = vrot.lane.b32.xlu0 %v815, 32
    %v818 = vpop.permute.xlu0 %817
    %v820 = vadd.f32 %v810, %v818
    %v821 = vtanh.pop %v820
    %823 = vrot.lane.b32.xlu0 %v821, 64
    %v824 = vpop.permute.xlu0 %823
    %v826 = vmul.f32 %v809, %v824
    %828 = vrot.lane.b32.xlu0 %v826, 32
    %v829 = vpop.permute.xlu0 %828
    %s831 = scalar_lea.vmem [#allocation3], 40
    %832 = vst.msk [vmem:[%s831] sm:$0xff] %vm228, %v829
    %s833 = scalar_lea.vmem [#allocation2], 48
    %v834 = vld [vmem:[%s833] sm:$0xff]
    %v835 = vsel %vm228, %v829, 0
    %837 = vmatprep.subr.mxu0 0.0
    %838 = vmatpush1.msra.mxu0 %v70
    %839 = vmatprep.subr.mxu0 0.0
    %840 = vmatpush1.msra.mxu0 %v71
    %841 = vmatprep.subr.mxu0 0.0
    %842 = vmatpush1.msra.mxu0 %v72
    %843 = vmatprep.subr.mxu0 0.0
    %844 = vmatpush1.msra.mxu0 %v73
    %845 = vmatprep.subr.mxu0 0.0
    %846 = vmatpush1.msra.mxu0 0.0
    %847 = vmatprep.subr.mxu0 0.0
    %848 = vmatpush1.msra.mxu0 0.0
    %849 = vmatprep.subr.mxu0 0.0
    %850 = vmatpush1.msra.mxu0 0.0
    %851 = vmatprep.subr.mxu0 0.0
    %852 = vmatpush1.msra.mxu0 0.0
    %853 = vmatprep.subr.mxu0 0.0
    %854 = vmatpush1.msra.mxu0 0.0
    %855 = vmatprep.subr.mxu0 0.0
    %856 = vmatpush1.msra.mxu0 0.0
    %857 = vmatprep.subr.mxu0 0.0
    %858 = vmatpush1.msra.mxu0 0.0
    %859 = vmatprep.subr.mxu0 0.0
    %860 = vmatpush1.msra.mxu0 0.0
    %861 = vmatprep.subr.mxu0 0.0
    %862 = vmatpush1.msra.mxu0 0.0
    %863 = vmatprep.subr.mxu0 0.0
    %864 = vmatpush1.msra.mxu0 0.0
    %865 = vmatprep.subr.mxu0 0.0
    %866 = vmatpush1.msra.mxu0 0.0
    %867 = vmatprep.subr.mxu0 0.0
    %868 = vmatpush1.msra.mxu0 0.0
    %869 = vmatprep.subr.mxu0 0.0
    %870 = vmatpush1.msra.mxu0 0.0
    %871 = vmatprep.subr.mxu0 0.0
    %872 = vmatpush1.msra.mxu0 0.0
    %873 = vmatprep.subr.mxu0 0.0
    %874 = vmatpush1.msra.mxu0 0.0
    %875 = vmatprep.subr.mxu0 0.0
    %876 = vmatpush1.msra.mxu0 0.0
    %877 = vmatprep.subr.mxu0 0.0
    %878 = vmatpush1.msra.mxu0 0.0
    %879 = vmatprep.subr.mxu0 0.0
    %880 = vmatpush1.msra.mxu0 0.0
    %881 = vmatprep.subr.mxu0 0.0
    %882 = vmatpush1.msra.mxu0 0.0
    %883 = vmatprep.subr.mxu0 0.0
    %884 = vmatpush1.msra.mxu0 0.0
    %885 = vmatprep.subr.mxu0 0.0
    %886 = vmatpush1.msra.mxu0 0.0
    %887 = vmatprep.subr.mxu0 0.0
    %888 = vmatpush1.msra.mxu0 0.0
    %889 = vmatprep.subr.mxu0 0.0
    %890 = vmatpush1.msra.mxu0 0.0
    %891 = vmatprep.subr.mxu0 0.0
    %892 = vmatpush1.msra.mxu0 0.0
    %893 = vmatprep.subr.mxu0 0.0
    %894 = vmatpush1.msra.mxu0 0.0
    %895 = vmatprep.subr.mxu0 0.0
    %896 = vmatpush1.msra.mxu0 0.0
    %897 = vmatprep.subr.mxu0 0.0
    %898 = vmatpush1.msra.mxu0 0.0
    %899 = vmatprep.subr.mxu0 0.0
    %900 = vmatpush1.msra.mxu0 0.0
    %901 = vmatprep.mubr.f32.mxu0 0.0
    %902 = vmatmul.mubr.f32.gmra.mrb[0].mxu0 %v835
    %v903 = vpop.f32.mrb[0].mxu0
    %v904 = vadd.f32 %v834, %v903
    %v905 = vpop.f32.mrb[0].mxu0
    %906 = vdwg.mxu0
    %v907 = vmul.f32 %v904, %v66
    %v908 = vtanh.pop %v907
    %v909 = vmul.f32 %v908, %v66
    %v910 = vadd.f32 %v909, %v67
    %v911 = vmul.f32 %v910, %v820
    %913 = vrot.lane.b32.xlu0 %v910, 64
    %v914 = vpop.permute.xlu0 %913
    %v916 = vmul.f32 %v910, %v914
    %918 = vrot.lane.b32.xlu0 %v916, 32
    %v919 = vpop.permute.xlu0 %918
    %v921 = vadd.f32 %v911, %v919
    %v922 = vtanh.pop %v921
    %924 = vrot.lane.b32.xlu0 %v922, 64
    %v925 = vpop.permute.xlu0 %924
    %v927 = vmul.f32 %v910, %v925
    %929 = vrot.lane.b32.xlu0 %v927, 32
    %v930 = vpop.permute.xlu0 %929
    %s932 = scalar_lea.vmem [#allocation3], 48
    %933 = vst.msk [vmem:[%s932] sm:$0xff] %vm228, %v930
    %s934 = scalar_lea.vmem [#allocation2], 56
    %v935 = vld [vmem:[%s934] sm:$0xff]
    %v936 = vsel %vm228, %v930, 0
    %938 = vmatprep.subr.mxu0 0.0
    %939 = vmatpush1.msra.mxu0 %v70
    %940 = vmatprep.subr.mxu0 0.0
    %941 = vmatpush1.msra.mxu0 %v71
    %942 = vmatprep.subr.mxu0 0.0
    %943 = vmatpush1.msra.mxu0 %v72
    %944 = vmatprep.subr.mxu0 0.0
    %945 = vmatpush1.msra.mxu0 %v73
    %946 = vmatprep.subr.mxu0 0.0
    %947 = vmatpush1.msra.mxu0 0.0
    %948 = vmatprep.subr.mxu0 0.0
    %949 = vmatpush1.msra.mxu0 0.0
    %950 = vmatprep.subr.mxu0 0.0
    %951 = vmatpush1.msra.mxu0 0.0
    %952 = vmatprep.subr.mxu0 0.0
    %953 = vmatpush1.msra.mxu0 0.0
    %954 = vmatprep.subr.mxu0 0.0
    %955 = vmatpush1.msra.mxu0 0.0
    %956 = vmatprep.subr.mxu0 0.0
    %957 = vmatpush1.msra.mxu0 0.0
    %958 = vmatprep.subr.mxu0 0.0
    %959 = vmatpush1.msra.mxu0 0.0
    %960 = vmatprep.subr.mxu0 0.0
    %961 = vmatpush1.msra.mxu0 0.0
    %962 = vmatprep.subr.mxu0 0.0
    %963 = vmatpush1.msra.mxu0 0.0
    %964 = vmatprep.subr.mxu0 0.0
    %965 = vmatpush1.msra.mxu0 0.0
    %966 = vmatprep.subr.mxu0 0.0
    %967 = vmatpush1.msra.mxu0 0.0
    %968 = vmatprep.subr.mxu0 0.0
    %969 = vmatpush1.msra.mxu0 0.0
    %970 = vmatprep.subr.mxu0 0.0
    %971 = vmatpush1.msra.mxu0 0.0
    %972 = vmatprep.subr.mxu0 0.0
    %973 = vmatpush1.msra.mxu0 0.0
    %974 = vmatprep.subr.mxu0 0.0
    %975 = vmatpush1.msra.mxu0 0.0
    %976 = vmatprep.subr.mxu0 0.0
    %977 = vmatpush1.msra.mxu0 0.0
    %978 = vmatprep.subr.mxu0 0.0
    %979 = vmatpush1.msra.mxu0 0.0
    %980 = vmatprep.subr.mxu0 0.0
    %981 = vmatpush1.msra.mxu0 0.0
    %982 = vmatprep.subr.mxu0 0.0
    %983 = vmatpush1.msra.mxu0 0.0
    %984 = vmatprep.subr.mxu0 0.0
    %985 = vmatpush1.msra.mxu0 0.0
    %986 = vmatprep.subr.mxu0 0.0
    %987 = vmatpush1.msra.mxu0 0.0
    %988 = vmatprep.subr.mxu0 0.0
    %989 = vmatpush1.msra.mxu0 0.0
    %990 = vmatprep.subr.mxu0 0.0
    %991 = vmatpush1.msra.mxu0 0.0
    %992 = vmatprep.subr.mxu0 0.0
    %993 = vmatpush1.msra.mxu0 0.0
    %994 = vmatprep.subr.mxu0 0.0
    %995 = vmatpush1.msra.mxu0 0.0
    %996 = vmatprep.subr.mxu0 0.0
    %997 = vmatpush1.msra.mxu0 0.0
    %998 = vmatprep.subr.mxu0 0.0
    %999 = vmatpush1.msra.mxu0 0.0
    %1000 = vmatprep.subr.mxu0 0.0
    %1001 = vmatpush1.msra.mxu0 0.0
    %1002 = vmatprep.mubr.f32.mxu0 0.0
    %1003 = vmatmul.mubr.f32.gmra.mrb[0].mxu0 %v936
    %v1004 = vpop.f32.mrb[0].mxu0
    %v1005 = vadd.f32 %v935, %v1004
    %v1006 = vpop.f32.mrb[0].mxu0
    %1007 = vdwg.mxu0
    %v1008 = vmul.f32 %v1005, %v66
    %v1009 = vtanh.pop %v1008
    %v1010 = vmul.f32 %v1009, %v66
    %v1011 = vadd.f32 %v1010, %v67
    %v1012 = vmul.f32 %v1011, %v921
    %1014 = vrot.lane.b32.xlu0 %v1011, 64
    %v1015 = vpop.permute.xlu0 %1014
    %v1017 = vmul.f32 %v1011, %v1015
    %1019 = vrot.lane.b32.xlu0 %v1017, 32
    %v1020 = vpop.permute.xlu0 %1019
    %v1022 = vadd.f32 %v1012, %v1020
    %v1023 = vtanh.pop %v1022
    %1025 = vrot.lane.b32.xlu0 %v1023, 64
    %v1026 = vpop.permute.xlu0 %1025
    %v1028 = vmul.f32 %v1011, %v1026
    %1030 = vrot.lane.b32.xlu0 %v1028, 32
    %v1031 = vpop.permute.xlu0 %1030
    %s1033 = scalar_lea.vmem [#allocation3], 56
    %1034 = vst.msk [vmem:[%s1033] sm:$0xff] %vm228, %v1031
    %v1035 = vld [vmem:[%s4] sm:$0xff]
    %v1036 = vld [vmem:[%s4 + $0x8] sm:$0xff]
    %v1037 = vld [vmem:[%s4 + $0x10] sm:$0xff]
    %v1038 = vld [vmem:[%s4 + $0x18] sm:$0xff]
    %v1039 = vld [vmem:[%s5] sm:$0xff]
    %v1040 = vld [vmem:[%s5 + $0x8] sm:$0xff]
    %v1041 = vld [vmem:[%s5 + $0x10] sm:$0xff]
    %v1042 = vld [vmem:[%s5 + $0x18] sm:$0xff]
    %v1043 = vld [vmem:[%s6] sm:$0x1]
    %v1044 = vld [vmem:[#allocation3] sm:$0xff]
    %v1045 = vld [vmem:[#allocation3 + $0x8] sm:$0xff]
    %v1046 = vld [vmem:[#allocation3 + $0x10] sm:$0xff]
    %v1047 = vld [vmem:[#allocation3 + $0x18] sm:$0xff]
    %v1048 = vld [vmem:[#allocation3 + $0x20] sm:$0xff]
    %v1049 = vld [vmem:[#allocation3 + $0x28] sm:$0xff]
    %v1050 = vld [vmem:[#allocation3 + $0x30] sm:$0xff]
    %v1051 = vld [vmem:[#allocation3 + $0x38] sm:$0xff]
    %v1053 = vlaneseq
    %v1054 = vshrl.u32 %v1053, 7
    %v1055 = vsub.s32 0, %v1054
    %v1056 = vrot.slane %v1043, %v1055
    %v1059 = vsel %vm228, %v1044, 0
    %v1062 = vsel %vm228, %v1045, 0
    %v1065 = vsel %vm228, %v1046, 0
    %v1068 = vsel %vm228, %v1047, 0
    %v1071 = vsel %vm228, %v1048, 0
    %v1074 = vsel %vm228, %v1049, 0
    %v1077 = vsel %vm228, %v1050, 0
    %v1080 = vsel %vm228, %v1051, 0
    %1082 = vmatprep.subr.mxu0 0.0
    %1083 = vmatpush1.msra.mxu0 %v1035
    %1084 = vmatprep.subr.mxu0 0.0
    %1085 = vmatpush1.msra.mxu0 %v1036
    %1086 = vmatprep.subr.mxu0 0.0
    %1087 = vmatpush1.msra.mxu0 %v1037
    %1088 = vmatprep.subr.mxu0 0.0
    %1089 = vmatpush1.msra.mxu0 %v1038
    %1090 = vmatprep.subr.mxu0 0.0
    %1091 = vmatpush1.msra.mxu0 0.0
    %1092 = vmatprep.subr.mxu0 0.0
    %1093 = vmatpush1.msra.mxu0 0.0
    %1094 = vmatprep.subr.mxu0 0.0
    %1095 = vmatpush1.msra.mxu0 0.0
    %1096 = vmatprep.subr.mxu0 0.0
    %1097 = vmatpush1.msra.mxu0 0.0
    %1098 = vmatprep.subr.mxu0 0.0
    %1099 = vmatpush1.msra.mxu0 0.0
    %1100 = vmatprep.subr.mxu0 0.0
    %1101 = vmatpush1.msra.mxu0 0.0
    %1102 = vmatprep.subr.mxu0 0.0
    %1103 = vmatpush1.msra.mxu0 0.0
    %1104 = vmatprep.subr.mxu0 0.0
    %1105 = vmatpush1.msra.mxu0 0.0
    %1106 = vmatprep.subr.mxu0 0.0
    %1107 = vmatpush1.msra.mxu0 0.0
    %1108 = vmatprep.subr.mxu0 0.0
    %1109 = vmatpush1.msra.mxu0 0.0
    %1110 = vmatprep.subr.mxu0 0.0
    %1111 = vmatpush1.msra.mxu0 0.0
    %1112 = vmatprep.subr.mxu0 0.0
    %1113 = vmatpush1.msra.mxu0 0.0
    %1114 = vmatprep.subr.mxu0 0.0
    %1115 = vmatpush1.msra.mxu0 0.0
    %1116 = vmatprep.subr.mxu0 0.0
    %1117 = vmatpush1.msra.mxu0 0.0
    %1118 = vmatprep.subr.mxu0 0.0
    %1119 = vmatpush1.msra.mxu0 0.0
    %1120 = vmatprep.subr.mxu0 0.0
    %1121 = vmatpush1.msra.mxu0 0.0
    %1122 = vmatprep.subr.mxu0 0.0
    %1123 = vmatpush1.msra.mxu0 0.0
    %1124 = vmatprep.subr.mxu0 0.0
    %1125 = vmatpush1.msra.mxu0 0.0
    %1126 = vmatprep.subr.mxu0 0.0
    %1127 = vmatpush1.msra.mxu0 0.0
    %1128 = vmatprep.subr.mxu0 0.0
    %1129 = vmatpush1.msra.mxu0 0.0
    %1130 = vmatprep.subr.mxu0 0.0
    %1131 = vmatpush1.msra.mxu0 0.0
    %1132 = vmatprep.subr.mxu0 0.0
    %1133 = vmatpush1.msra.mxu0 0.0
    %1134 = vmatprep.subr.mxu0 0.0
    %1135 = vmatpush1.msra.mxu0 0.0
    %1136 = vmatprep.subr.mxu0 0.0
    %1137 = vmatpush1.msra.mxu0 0.0
    %1138 = vmatprep.subr.mxu0 0.0
    %1139 = vmatpush1.msra.mxu0 0.0
    %1140 = vmatprep.subr.mxu0 0.0
    %1141 = vmatpush1.msra.mxu0 0.0
    %1142 = vmatprep.subr.mxu0 0.0
    %1143 = vmatpush1.msra.mxu0 0.0
    %1144 = vmatprep.subr.mxu0 0.0
    %1145 = vmatpush1.msra.mxu0 0.0
    %1146 = vmatprep.mubr.f32.mxu0 0.0
    %1147 = vmatmul.mubr.f32.gmra.mrb[0].mxu0 %v1059
    %v1148 = vpop.f32.mrb[0].mxu0
    %v1149 = vadd.f32 %v1056, %v1148
    %v1150 = vpop.f32.mrb[0].mxu0
    %1151 = vmatprep.mubr.f32.mxu0 0.0
    %1152 = vmatmul.mubr.f32.gmra.mrb[0].mxu0 %v1062
    %v1153 = vpop.f32.mrb[0].mxu0
    %v1154 = vadd.f32 %v1056, %v1153
    %v1155 = vpop.f32.mrb[0].mxu0
    %1156 = vmatprep.mubr.f32.mxu0 0.0
    %1157 = vmatmul.mubr.f32.gmra.mrb[0].mxu0 %v1065
    %v1158 = vpop.f32.mrb[0].mxu0
    %v1159 = vadd.f32 %v1056, %v1158
    %v1160 = vpop.f32.mrb[0].mxu0
    %1161 = vmatprep.mubr.f32.mxu0 0.0
    %1162 = vmatmul.mubr.f32.gmra.mrb[0].mxu0 %v1068
    %v1163 = vpop.f32.mrb[0].mxu0
    %v1164 = vadd.f32 %v1056, %v1163
    %v1165 = vpop.f32.mrb[0].mxu0
    %1166 = vmatprep.mubr.f32.mxu0 0.0
    %1167 = vmatmul.mubr.f32.gmra.mrb[0].mxu0 %v1071
    %v1168 = vpop.f32.mrb[0].mxu0
    %v1169 = vadd.f32 %v1056, %v1168
    %v1170 = vpop.f32.mrb[0].mxu0
    %1171 = vmatprep.mubr.f32.mxu0 0.0
    %1172 = vmatmul.mubr.f32.gmra.mrb[0].mxu0 %v1074
    %v1173 = vpop.f32.mrb[0].mxu0
    %v1174 = vadd.f32 %v1056, %v1173
    %v1175 = vpop.f32.mrb[0].mxu0
    %1176 = vmatprep.mubr.f32.mxu0 0.0
    %1177 = vmatmul.mubr.f32.gmra.mrb[0].mxu0 %v1077
    %v1178 = vpop.f32.mrb[0].mxu0
    %v1179 = vadd.f32 %v1056, %v1178
    %v1180 = vpop.f32.mrb[0].mxu0
    %1181 = vmatprep.mubr.f32.mxu0 0.0
    %1182 = vmatmul.mubr.f32.gmra.mrb[0].mxu0 %v1080
    %v1183 = vpop.f32.mrb[0].mxu0
    %v1184 = vadd.f32 %v1056, %v1183
    %v1185 = vpop.f32.mrb[0].mxu0
    %1186 = vdwg.mxu0
    %1187 = vst [vmem:[#allocation2] sm:$0xff] %v1149
    %1188 = vst [vmem:[#allocation2 + $0x8] sm:$0xff] %v1154
    %1189 = vst [vmem:[#allocation2 + $0x10] sm:$0xff] %v1159
    %1190 = vst [vmem:[#allocation2 + $0x18] sm:$0xff] %v1164
    %1191 = vst [vmem:[#allocation2 + $0x20] sm:$0xff] %v1169
    %1192 = vst [vmem:[#allocation2 + $0x28] sm:$0xff] %v1174
    %1193 = vst [vmem:[#allocation2 + $0x30] sm:$0xff] %v1179
    %1194 = vst [vmem:[#allocation2 + $0x38] sm:$0xff] %v1184
    %v1195 = vld [vmem:[#allocation2] sm:$0xff]
    %1196 = vmatprep.subr.mxu0 0.0
    %1197 = vmatpush1.msra.mxu0 %v1039
    %1198 = vmatprep.subr.mxu0 0.0
    %1199 = vmatpush1.msra.mxu0 %v1040
    %1200 = vmatprep.subr.mxu0 0.0
    %1201 = vmatpush1.msra.mxu0 %v1041
    %1202 = vmatprep.subr.mxu0 0.0
    %1203 = vmatpush1.msra.mxu0 %v1042
    %1204 = vmatprep.subr.mxu0 0.0
    %1205 = vmatpush1.msra.mxu0 0.0
    %1206 = vmatprep.subr.mxu0 0.0
    %1207 = vmatpush1.msra.mxu0 0.0
    %1208 = vmatprep.subr.mxu0 0.0
    %1209 = vmatpush1.msra.mxu0 0.0
    %1210 = vmatprep.subr.mxu0 0.0
    %1211 = vmatpush1.msra.mxu0 0.0
    %1212 = vmatprep.subr.mxu0 0.0
    %1213 = vmatpush1.msra.mxu0 0.0
    %1214 = vmatprep.subr.mxu0 0.0
    %1215 = vmatpush1.msra.mxu0 0.0
    %1216 = vmatprep.subr.mxu0 0.0
    %1217 = vmatpush1.msra.mxu0 0.0
    %1218 = vmatprep.subr.mxu0 0.0
    %1219 = vmatpush1.msra.mxu0 0.0
    %1220 = vmatprep.subr.mxu0 0.0
    %1221 = vmatpush1.msra.mxu0 0.0
    %1222 = vmatprep.subr.mxu0 0.0
    %1223 = vmatpush1.msra.mxu0 0.0
    %1224 = vmatprep.subr.mxu0 0.0
    %1225 = vmatpush1.msra.mxu0 0.0
    %1226 = vmatprep.subr.mxu0 0.0
    %1227 = vmatpush1.msra.mxu0 0.0
    %1228 = vmatprep.subr.mxu0 0.0
    %1229 = vmatpush1.msra.mxu0 0.0
    %1230 = vmatprep.subr.mxu0 0.0
    %1231 = vmatpush1.msra.mxu0 0.0
    %1232 = vmatprep.subr.mxu0 0.0
    %1233 = vmatpush1.msra.mxu0 0.0
    %1234 = vmatprep.subr.mxu0 0.0
    %1235 = vmatpush1.msra.mxu0 0.0
    %1236 = vmatprep.subr.mxu0 0.0
    %1237 = vmatpush1.msra.mxu0 0.0
    %1238 = vmatprep.subr.mxu0 0.0
    %1239 = vmatpush1.msra.mxu0 0.0
    %1240 = vmatprep.subr.mxu0 0.0
    %1241 = vmatpush1.msra.mxu0 0.0
    %1242 = vmatprep.subr.mxu0 0.0
    %1243 = vmatpush1.msra.mxu0 0.0
    %1244 = vmatprep.subr.mxu0 0.0
    %1245 = vmatpush1.msra.mxu0 0.0
    %1246 = vmatprep.subr.mxu0 0.0
    %1247 = vmatpush1.msra.mxu0 0.0
    %1248 = vmatprep.subr.mxu0 0.0
    %1249 = vmatpush1.msra.mxu0 0.0
    %1250 = vmatprep.subr.mxu0 0.0
    %1251 = vmatpush1.msra.mxu0 0.0
    %1252 = vmatprep.subr.mxu0 0.0
    %1253 = vmatpush1.msra.mxu0 0.0
    %1254 = vmatprep.subr.mxu0 0.0
    %1255 = vmatpush1.msra.mxu0 0.0
    %1256 = vmatprep.subr.mxu0 0.0
    %1257 = vmatpush1.msra.mxu0 0.0
    %1258 = vmatprep.subr.mxu0 0.0
    %1259 = vmatpush1.msra.mxu0 0.0
    %1260 = vmatprep.mubr.f32.mxu0 0.0
    %1261 = vmatmul.mubr.f32.gmra.mrb[0].mxu0 %v230
    %v1262 = vpop.f32.mrb[0].mxu0
    %v1263 = vadd.f32 %v1195, %v1262
    %v1264 = vpop.f32.mrb[0].mxu0
    %1265 = vdwg.mxu0
    %v1266 = vmul.f32 %v1263, %v66
    %v1267 = vtanh.pop %v1266
    %v1268 = vmul.f32 %v1267, %v66
    %v1269 = vadd.f32 %v1268, %v67
    %v1270 = vmul.f32 %v1269, 0.0
    %1272 = vrot.lane.b32.xlu0 %v1269, 64
    %v1273 = vpop.permute.xlu0 %1272
    %v1275 = vmul.f32 %v1269, %v1273
    %1277 = vrot.lane.b32.xlu0 %v1275, 32
    %v1278 = vpop.permute.xlu0 %1277
    %v1280 = vadd.f32 %v1270, %v1278
    %v1281 = vtanh.pop %v1280
    %1283 = vrot.lane.b32.xlu0 %v1281, 64
    %v1284 = vpop.permute.xlu0 %1283
    %v1286 = vmul.f32 %v1269, %v1284
    %v1287 = vld [vmem:[%s328] sm:$0xff]
    %1289 = vrot.lane.b32.xlu0 %v1286, 32
    %v1290 = vpop.permute.xlu0 %1289
    %v1291 = vsel %vm228, %v1290, 0
    %1293 = vmatprep.subr.mxu0 0.0
    %1294 = vmatpush1.msra.mxu0 %v1039
    %1295 = vmatprep.subr.mxu0 0.0
    %1296 = vmatpush1.msra.mxu0 %v1040
    %1297 = vmatprep.subr.mxu0 0.0
    %1298 = vmatpush1.msra.mxu0 %v1041
    %1299 = vmatprep.subr.mxu0 0.0
    %1300 = vmatpush1.msra.mxu0 %v1042
    %1301 = vmatprep.subr.mxu0 0.0
    %1302 = vmatpush1.msra.mxu0 0.0
    %1303 = vmatprep.subr.mxu0 0.0
    %1304 = vmatpush1.msra.mxu0 0.0
    %1305 = vmatprep.subr.mxu0 0.0
    %1306 = vmatpush1.msra.mxu0 0.0
    %1307 = vmatprep.subr.mxu0 0.0
    %1308 = vmatpush1.msra.mxu0 0.0
    %1309 = vmatprep.subr.mxu0 0.0
    %1310 = vmatpush1.msra.mxu0 0.0
    %1311 = vmatprep.subr.mxu0 0.0
    %1312 = vmatpush1.msra.mxu0 0.0
    %1313 = vmatprep.subr.mxu0 0.0
    %1314 = vmatpush1.msra.mxu0 0.0
    %1315 = vmatprep.subr.mxu0 0.0
    %1316 = vmatpush1.msra.mxu0 0.0
    %1317 = vmatprep.subr.mxu0 0.0
    %1318 = vmatpush1.msra.mxu0 0.0
    %1319 = vmatprep.subr.mxu0 0.0
    %1320 = vmatpush1.msra.mxu0 0.0
    %1321 = vmatprep.subr.mxu0 0.0
    %1322 = vmatpush1.msra.mxu0 0.0
    %1323 = vmatprep.subr.mxu0 0.0
    %1324 = vmatpush1.msra.mxu0 0.0
    %1325 = vmatprep.subr.mxu0 0.0
    %1326 = vmatpush1.msra.mxu0 0.0
    %1327 = vmatprep.subr.mxu0 0.0
    %1328 = vmatpush1.msra.mxu0 0.0
    %1329 = vmatprep.subr.mxu0 0.0
    %1330 = vmatpush1.msra.mxu0 0.0
    %1331 = vmatprep.subr.mxu0 0.0
    %1332 = vmatpush1.msra.mxu0 0.0
    %1333 = vmatprep.subr.mxu0 0.0
    %1334 = vmatpush1.msra.mxu0 0.0
    %1335 = vmatprep.subr.mxu0 0.0
    %1336 = vmatpush1.msra.mxu0 0.0
    %1337 = vmatprep.subr.mxu0 0.0
    %1338 = vmatpush1.msra.mxu0 0.0
    %1339 = vmatprep.subr.mxu0 0.0
    %1340 = vmatpush1.msra.mxu0 0.0
    %1341 = vmatprep.subr.mxu0 0.0
    %1342 = vmatpush1.msra.mxu0 0.0
    %1343 = vmatprep.subr.mxu0 0.0
    %1344 = vmatpush1.msra.mxu0 0.0
    %1345 = vmatprep.subr.mxu0 0.0
    %1346 = vmatpush1.msra.mxu0 0.0
    %1347 = vmatprep.subr.mxu0 0.0
    %1348 = vmatpush1.msra.mxu0 0.0
    %1349 = vmatprep.subr.mxu0 0.0
    %1350 = vmatpush1.msra.mxu0 0.0
    %1351 = vmatprep.subr.mxu0 0.0
    %1352 = vmatpush1.msra.mxu0 0.0
    %1353 = vmatprep.subr.mxu0 0.0
    %1354 = vmatpush1.msra.mxu0 0.0
    %1355 = vmatprep.subr.mxu0 0.0
    %1356 = vmatpush1.msra.mxu0 0.0
    %1357 = vmatprep.mubr.f32.mxu0 0.0
    %1358 = vmatmul.mubr.f32.gmra.mrb[0].mxu0 %v1291
    %v1359 = vpop.f32.mrb[0].mxu0
    %v1360 = vadd.f32 %v1287, %v1359
    %v1361 = vpop.f32.mrb[0].mxu0
    %1362 = vdwg.mxu0
    %v1363 = vmul.f32 %v1360, %v66
    %v1364 = vtanh.pop %v1363
    %v1365 = vmul.f32 %v1364, %v66
    %v1366 = vadd.f32 %v1365, %v67
    %v1367 = vmul.f32 %v1366, %v1280
    %1369 = vrot.lane.b32.xlu0 %v1366, 64
    %v1370 = vpop.permute.xlu0 %1369
    %v1372 = vmul.f32 %v1366, %v1370
    %1374 = vrot.lane.b32.xlu0 %v1372, 32
    %v1375 = vpop.permute.xlu0 %1374
    %v1377 = vadd.f32 %v1367, %v1375
    %v1378 = vtanh.pop %v1377
    %1380 = vrot.lane.b32.xlu0 %v1378, 64
    %v1381 = vpop.permute.xlu0 %1380
    %v1383 = vmul.f32 %v1366, %v1381
    %v1384 = vld [vmem:[%s429] sm:$0xff]
    %1386 = vrot.lane.b32.xlu0 %v1383, 32
    %v1387 = vpop.permute.xlu0 %1386
    %v1388 = vsel %vm228, %v1387, 0
    %1390 = vmatprep.subr.mxu0 0.0
    %1391 = vmatpush1.msra.mxu0 %v1039
    %1392 = vmatprep.subr.mxu0 0.0
    %1393 = vmatpush1.msra.mxu0 %v1040
    %1394 = vmatprep.subr.mxu0 0.0
    %1395 = vmatpush1.msra.mxu0 %v1041
    %1396 = vmatprep.subr.mxu0 0.0
    %1397 = vmatpush1.msra.mxu0 %v1042
    %1398 = vmatprep.subr.mxu0 0.0
    %1399 = vmatpush1.msra.mxu0 0.0
    %1400 = vmatprep.subr.mxu0 0.0
    %1401 = vmatpush1.msra.mxu0 0.0
    %1402 = vmatprep.subr.mxu0 0.0
    %1403 = vmatpush1.msra.mxu0 0.0
    %1404 = vmatprep.subr.mxu0 0.0
    %1405 = vmatpush1.msra.mxu0 0.0
    %1406 = vmatprep.subr.mxu0 0.0
    %1407 = vmatpush1.msra.mxu0 0.0
    %1408 = vmatprep.subr.mxu0 0.0
    %1409 = vmatpush1.msra.mxu0 0.0
    %1410 = vmatprep.subr.mxu0 0.0
    %1411 = vmatpush1.msra.mxu0 0.0
    %1412 = vmatprep.subr.mxu0 0.0
    %1413 = vmatpush1.msra.mxu0 0.0
    %1414 = vmatprep.subr.mxu0 0.0
    %1415 = vmatpush1.msra.mxu0 0.0
    %1416 = vmatprep.subr.mxu0 0.0
    %1417 = vmatpush1.msra.mxu0 0.0
    %1418 = vmatprep.subr.mxu0 0.0
    %1419 = vmatpush1.msra.mxu0 0.0
    %1420 = vmatprep.subr.mxu0 0.0
    %1421 = vmatpush1.msra.mxu0 0.0
    %1422 = vmatprep.subr.mxu0 0.0
    %1423 = vmatpush1.msra.mxu0 0.0
    %1424 = vmatprep.subr.mxu0 0.0
    %1425 = vmatpush1.msra.mxu0 0.0
    %1426 = vmatprep.subr.mxu0 0.0
    %1427 = vmatpush1.msra.mxu0 0.0
    %1428 = vmatprep.subr.mxu0 0.0
    %1429 = vmatpush1.msra.mxu0 0.0
    %1430 = vmatprep.subr.mxu0 0.0
    %1431 = vmatpush1.msra.mxu0 0.0
    %1432 = vmatprep.subr.mxu0 0.0
    %1433 = vmatpush1.msra.mxu0 0.0
    %1434 = vmatprep.subr.mxu0 0.0
    %1435 = vmatpush1.msra.mxu0 0.0
    %1436 = vmatprep.subr.mxu0 0.0
    %1437 = vmatpush1.msra.mxu0 0.0
    %1438 = vmatprep.subr.mxu0 0.0
    %1439 = vmatpush1.msra.mxu0 0.0
    %1440 = vmatprep.subr.mxu0 0.0
    %1441 = vmatpush1.msra.mxu0 0.0
    %1442 = vmatprep.subr.mxu0 0.0
    %1443 = vmatpush1.msra.mxu0 0.0
    %1444 = vmatprep.subr.mxu0 0.0
    %1445 = vmatpush1.msra.mxu0 0.0
    %1446 = vmatprep.subr.mxu0 0.0
    %1447 = vmatpush1.msra.mxu0 0.0
    %1448 = vmatprep.subr.mxu0 0.0
    %1449 = vmatpush1.msra.mxu0 0.0
    %1450 = vmatprep.subr.mxu0 0.0
    %1451 = vmatpush1.msra.mxu0 0.0
    %1452 = vmatprep.subr.mxu0 0.0
    %1453 = vmatpush1.msra.mxu0 0.0
    %1454 = vmatprep.mubr.f32.mxu0 0.0
    %1455 = vmatmul.mubr.f32.gmra.mrb[0].mxu0 %v1388
    %v1456 = vpop.f32.mrb[0].mxu0
    %v1457 = vadd.f32 %v1384, %v1456
    %v1458 = vpop.f32.mrb[0].mxu0
    %1459 = vdwg.mxu0
    %v1460 = vmul.f32 %v1457, %v66
    %v1461 = vtanh.pop %v1460
    %v1462 = vmul.f32 %v1461, %v66
    %v1463 = vadd.f32 %v1462, %v67
    %v1464 = vmul.f32 %v1463, %v1377
    %1466 = vrot.lane.b32.xlu0 %v1463, 64
    %v1467 = vpop.permute.xlu0 %1466
    %v1469 = vmul.f32 %v1463, %v1467
    %1471 = vrot.lane.b32.xlu0 %v1469, 32
    %v1472 = vpop.permute.xlu0 %1471
    %v1474 = vadd.f32 %v1464, %v1472
    %v1475 = vtanh.pop %v1474
    %1477 = vrot.lane.b32.xlu0 %v1475, 64
    %v1478 = vpop.permute.xlu0 %1477
    %v1480 = vmul.f32 %v1463, %v1478
    %v1481 = vld [vmem:[%s530] sm:$0xff]
    %1483 = vrot.lane.b32.xlu0 %v1480, 32
    %v1484 = vpop.permute.xlu0 %1483
    %v1485 = vsel %vm228, %v1484, 0
    %1487 = vmatprep.subr.mxu0 0.0
    %1488 = vmatpush1.msra.mxu0 %v1039
    %1489 = vmatprep.subr.mxu0 0.0
    %1490 = vmatpush1.msra.mxu0 %v1040
    %1491 = vmatprep.subr.mxu0 0.0
    %1492 = vmatpush1.msra.mxu0 %v1041
    %1493 = vmatprep.subr.mxu0 0.0
    %1494 = vmatpush1.msra.mxu0 %v1042
    %1495 = vmatprep.subr.mxu0 0.0
    %1496 = vmatpush1.msra.mxu0 0.0
    %1497 = vmatprep.subr.mxu0 0.0
    %1498 = vmatpush1.msra.mxu0 0.0
    %1499 = vmatprep.subr.mxu0 0.0
    %1500 = vmatpush1.msra.mxu0 0.0
    %1501 = vmatprep.subr.mxu0 0.0
    %1502 = vmatpush1.msra.mxu0 0.0
    %1503 = vmatprep.subr.mxu0 0.0
    %1504 = vmatpush1.msra.mxu0 0.0
    %1505 = vmatprep.subr.mxu0 0.0
    %1506 = vmatpush1.msra.mxu0 0.0
    %1507 = vmatprep.subr.mxu0 0.0
    %1508 = vmatpush1.msra.mxu0 0.0
    %1509 = vmatprep.subr.mxu0 0.0
    %1510 = vmatpush1.msra.mxu0 0.0
    %1511 = vmatprep.subr.mxu0 0.0
    %1512 = vmatpush1.msra.mxu0 0.0
    %1513 = vmatprep.subr.mxu0 0.0
    %1514 = vmatpush1.msra.mxu0 0.0
    %1515 = vmatprep.subr.mxu0 0.0
    %1516 = vmatpush1.msra.mxu0 0.0
    %1517 = vmatprep.subr.mxu0 0.0
    %1518 = vmatpush1.msra.mxu0 0.0
    %1519 = vmatprep.subr.mxu0 0.0
    %1520 = vmatpush1.msra.mxu0 0.0
    %1521 = vmatprep.subr.mxu0 0.0
    %1522 = vmatpush1.msra.mxu0 0.0
    %1523 = vmatprep.subr.mxu0 0.0
    %1524 = vmatpush1.msra.mxu0 0.0
    %1525 = vmatprep.subr.mxu0 0.0
    %1526 = vmatpush1.msra.mxu0 0.0
    %1527 = vmatprep.subr.mxu0 0.0
    %1528 = vmatpush1.msra.mxu0 0.0
    %1529 = vmatprep.subr.mxu0 0.0
    %1530 = vmatpush1.msra.mxu0 0.0
    %1531 = vmatprep.subr.mxu0 0.0
    %1532 = vmatpush1.msra.mxu0 0.0
    %1533 = vmatprep.subr.mxu0 0.0
    %1534 = vmatpush1.msra.mxu0 0.0
    %1535 = vmatprep.subr.mxu0 0.0
    %1536 = vmatpush1.msra.mxu0 0.0
    %1537 = vmatprep.subr.mxu0 0.0
    %1538 = vmatpush1.msra.mxu0 0.0
    %1539 = vmatprep.subr.mxu0 0.0
    %1540 = vmatpush1.msra.mxu0 0.0
    %1541 = vmatprep.subr.mxu0 0.0
    %1542 = vmatpush1.msra.mxu0 0.0
    %1543 = vmatprep.subr.mxu0 0.0
    %1544 = vmatpush1.msra.mxu0 0.0
    %1545 = vmatprep.subr.mxu0 0.0
    %1546 = vmatpush1.msra.mxu0 0.0
    %1547 = vmatprep.subr.mxu0 0.0
    %1548 = vmatpush1.msra.mxu0 0.0
    %1549 = vmatprep.subr.mxu0 0.0
    %1550 = vmatpush1.msra.mxu0 0.0
    %1551 = vmatprep.mubr.f32.mxu0 0.0
    %1552 = vmatmul.mubr.f32.gmra.mrb[0].mxu0 %v1485
    %v1553 = vpop.f32.mrb[0].mxu0
    %v1554 = vadd.f32 %v1481, %v1553
    %v1555 = vpop.f32.mrb[0].mxu0
    %1556 = vdwg.mxu0
    %v1557 = vmul.f32 %v1554, %v66
    %v1558 = vtanh.pop %v1557
    %v1559 = vmul.f32 %v1558, %v66
    %v1560 = vadd.f32 %v1559, %v67
    %v1561 = vmul.f32 %v1560, %v1474
    %1563 = vrot.lane.b32.xlu0 %v1560, 64
    %v1564 = vpop.permute.xlu0 %1563
    %v1566 = vmul.f32 %v1560, %v1564
    %1568 = vrot.lane.b32.xlu0 %v1566, 32
    %v1569 = vpop.permute.xlu0 %1568
    %v1571 = vadd.f32 %v1561, %v1569
    %v1572 = vtanh.pop %v1571
    %1574 = vrot.lane.b32.xlu0 %v1572, 64
    %v1575 = vpop.permute.xlu0 %1574
    %v1577 = vmul.f32 %v1560, %v1575
    %v1578 = vld [vmem:[%s631] sm:$0xff]
    %1580 = vrot.lane.b32.xlu0 %v1577, 32
    %v1581 = vpop.permute.xlu0 %1580
    %v1582 = vsel %vm228, %v1581, 0
    %1584 = vmatprep.subr.mxu0 0.0
    %1585 = vmatpush1.msra.mxu0 %v1039
    %1586 = vmatprep.subr.mxu0 0.0
    %1587 = vmatpush1.msra.mxu0 %v1040
    %1588 = vmatprep.subr.mxu0 0.0
    %1589 = vmatpush1.msra.mxu0 %v1041
    %1590 = vmatprep.subr.mxu0 0.0
    %1591 = vmatpush1.msra.mxu0 %v1042
    %1592 = vmatprep.subr.mxu0 0.0
    %1593 = vmatpush1.msra.mxu0 0.0
    %1594 = vmatprep.subr.mxu0 0.0
    %1595 = vmatpush1.msra.mxu0 0.0
    %1596 = vmatprep.subr.mxu0 0.0
    %1597 = vmatpush1.msra.mxu0 0.0
    %1598 = vmatprep.subr.mxu0 0.0
    %1599 = vmatpush1.msra.mxu0 0.0
    %1600 = vmatprep.subr.mxu0 0.0
    %1601 = vmatpush1.msra.mxu0 0.0
    %1602 = vmatprep.subr.mxu0 0.0
    %1603 = vmatpush1.msra.mxu0 0.0
    %1604 = vmatprep.subr.mxu0 0.0
    %1605 = vmatpush1.msra.mxu0 0.0
    %1606 = vmatprep.subr.mxu0 0.0
    %1607 = vmatpush1.msra.mxu0 0.0
    %1608 = vmatprep.subr.mxu0 0.0
    %1609 = vmatpush1.msra.mxu0 0.0
    %1610 = vmatprep.subr.mxu0 0.0
    %1611 = vmatpush1.msra.mxu0 0.0
    %1612 = vmatprep.subr.mxu0 0.0
    %1613 = vmatpush1.msra.mxu0 0.0
    %1614 = vmatprep.subr.mxu0 0.0
    %1615 = vmatpush1.msra.mxu0 0.0
    %1616 = vmatprep.subr.mxu0 0.0
    %1617 = vmatpush1.msra.mxu0 0.0
    %1618 = vmatprep.subr.mxu0 0.0
    %1619 = vmatpush1.msra.mxu0 0.0
    %1620 = vmatprep.subr.mxu0 0.0
    %1621 = vmatpush1.msra.mxu0 0.0
    %1622 = vmatprep.subr.mxu0 0.0
    %1623 = vmatpush1.msra.mxu0 0.0
    %1624 = vmatprep.subr.mxu0 0.0
    %1625 = vmatpush1.msra.mxu0 0.0
    %1626 = vmatprep.subr.mxu0 0.0
    %1627 = vmatpush1.msra.mxu0 0.0
    %1628 = vmatprep.subr.mxu0 0.0
    %1629 = vmatpush1.msra.mxu0 0.0
    %1630 = vmatprep.subr.mxu0 0.0
    %1631 = vmatpush1.msra.mxu0 0.0
    %1632 = vmatprep.subr.mxu0 0.0
    %1633 = vmatpush1.msra.mxu0 0.0
    %1634 = vmatprep.subr.mxu0 0.0
    %1635 = vmatpush1.msra.mxu0 0.0
    %1636 = vmatprep.subr.mxu0 0.0
    %1637 = vmatpush1.msra.mxu0 0.0
    %1638 = vmatprep.subr.mxu0 0.0
    %1639 = vmatpush1.msra.mxu0 0.0
    %1640 = vmatprep.subr.mxu0 0.0
    %1641 = vmatpush1.msra.mxu0 0.0
    %1642 = vmatprep.subr.mxu0 0.0
    %1643 = vmatpush1.msra.mxu0 0.0
    %1644 = vmatprep.subr.mxu0 0.0
    %1645 = vmatpush1.msra.mxu0 0.0
    %1646 = vmatprep.subr.mxu0 0.0
    %1647 = vmatpush1.msra.mxu0 0.0
    %1648 = vmatprep.mubr.f32.mxu0 0.0
    %1649 = vmatmul.mubr.f32.gmra.mrb[0].mxu0 %v1582
    %v1650 = vpop.f32.mrb[0].mxu0
    %v1651 = vadd.f32 %v1578, %v1650
    %v1652 = vpop.f32.mrb[0].mxu0
    %1653 = vdwg.mxu0
    %v1654 = vmul.f32 %v1651, %v66
    %v1655 = vtanh.pop %v1654
    %v1656 = vmul.f32 %v1655, %v66
    %v1657 = vadd.f32 %v1656, %v67
    %v1658 = vmul.f32 %v1657, %v1571
    %1660 = vrot.lane.b32.xlu0 %v1657, 64
    %v1661 = vpop.permute.xlu0 %1660
    %v1663 = vmul.f32 %v1657, %v1661
    %1665 = vrot.lane.b32.xlu0 %v1663, 32
    %v1666 = vpop.permute.xlu0 %1665
    %v1668 = vadd.f32 %v1658, %v1666
    %v1669 = vtanh.pop %v1668
    %1671 = vrot.lane.b32.xlu0 %v1669, 64
    %v1672 = vpop.permute.xlu0 %1671
    %v1674 = vmul.f32 %v1657, %v1672
    %v1675 = vld [vmem:[%s732] sm:$0xff]
    %1677 = vrot.lane.b32.xlu0 %v1674, 32
    %v1678 = vpop.permute.xlu0 %1677
    %v1679 = vsel %vm228, %v1678, 0
    %1681 = vmatprep.subr.mxu0 0.0
    %1682 = vmatpush1.msra.mxu0 %v1039
    %1683 = vmatprep.subr.mxu0 0.0
    %1684 = vmatpush1.msra.mxu0 %v1040
    %1685 = vmatprep.subr.mxu0 0.0
    %1686 = vmatpush1.msra.mxu0 %v1041
    %1687 = vmatprep.subr.mxu0 0.0
    %1688 = vmatpush1.msra.mxu0 %v1042
    %1689 = vmatprep.subr.mxu0 0.0
    %1690 = vmatpush1.msra.mxu0 0.0
    %1691 = vmatprep.subr.mxu0 0.0
    %1692 = vmatpush1.msra.mxu0 0.0
    %1693 = vmatprep.subr.mxu0 0.0
    %1694 = vmatpush1.msra.mxu0 0.0
    %1695 = vmatprep.subr.mxu0 0.0
    %1696 = vmatpush1.msra.mxu0 0.0
    %1697 = vmatprep.subr.mxu0 0.0
    %1698 = vmatpush1.msra.mxu0 0.0
    %1699 = vmatprep.subr.mxu0 0.0
    %1700 = vmatpush1.msra.mxu0 0.0
    %1701 = vmatprep.subr.mxu0 0.0
    %1702 = vmatpush1.msra.mxu0 0.0
    %1703 = vmatprep.subr.mxu0 0.0
    %1704 = vmatpush1.msra.mxu0 0.0
    %1705 = vmatprep.subr.mxu0 0.0
    %1706 = vmatpush1.msra.mxu0 0.0
    %1707 = vmatprep.subr.mxu0 0.0
    %1708 = vmatpush1.msra.mxu0 0.0
    %1709 = vmatprep.subr.mxu0 0.0
    %1710 = vmatpush1.msra.mxu0 0.0
    %1711 = vmatprep.subr.mxu0 0.0
    %1712 = vmatpush1.msra.mxu0 0.0
    %1713 = vmatprep.subr.mxu0 0.0
    %1714 = vmatpush1.msra.mxu0 0.0
    %1715 = vmatprep.subr.mxu0 0.0
    %1716 = vmatpush1.msra.mxu0 0.0
    %1717 = vmatprep.subr.mxu0 0.0
    %1718 = vmatpush1.msra.mxu0 0.0
    %1719 = vmatprep.subr.mxu0 0.0
    %1720 = vmatpush1.msra.mxu0 0.0
    %1721 = vmatprep.subr.mxu0 0.0
    %1722 = vmatpush1.msra.mxu0 0.0
    %1723 = vmatprep.subr.mxu0 0.0
    %1724 = vmatpush1.msra.mxu0 0.0
    %1725 = vmatprep.subr.mxu0 0.0
    %1726 = vmatpush1.msra.mxu0 0.0
    %1727 = vmatprep.subr.mxu0 0.0
    %1728 = vmatpush1.msra.mxu0 0.0
    %1729 = vmatprep.subr.mxu0 0.0
    %1730 = vmatpush1.msra.mxu0 0.0
    %1731 = vmatprep.subr.mxu0 0.0
    %1732 = vmatpush1.msra.mxu0 0.0
    %1733 = vmatprep.subr.mxu0 0.0
    %1734 = vmatpush1.msra.mxu0 0.0
    %1735 = vmatprep.subr.mxu0 0.0
    %1736 = vmatpush1.msra.mxu0 0.0
    %1737 = vmatprep.subr.mxu0 0.0
    %1738 = vmatpush1.msra.mxu0 0.0
    %1739 = vmatprep.subr.mxu0 0.0
    %1740 = vmatpush1.msra.mxu0 0.0
    %1741 = vmatprep.subr.mxu0 0.0
    %1742 = vmatpush1.msra.mxu0 0.0
    %1743 = vmatprep.subr.mxu0 0.0
    %1744 = vmatpush1.msra.mxu0 0.0
    %1745 = vmatprep.mubr.f32.mxu0 0.0
    %1746 = vmatmul.mubr.f32.gmra.mrb[0].mxu0 %v1679
    %v1747 = vpop.f32.mrb[0].mxu0
    %v1748 = vadd.f32 %v1675, %v1747
    %v1749 = vpop.f32.mrb[0].mxu0
    %1750 = vdwg.mxu0
    %v1751 = vmul.f32 %v1748, %v66
    %v1752 = vtanh.pop %v1751
    %v1753 = vmul.f32 %v1752, %v66
    %v1754 = vadd.f32 %v1753, %v67
    %v1755 = vmul.f32 %v1754, %v1668
    %1757 = vrot.lane.b32.xlu0 %v1754, 64
    %v1758 = vpop.permute.xlu0 %1757
    %v1760 = vmul.f32 %v1754, %v1758
    %1762 = vrot.lane.b32.xlu0 %v1760, 32
    %v1763 = vpop.permute.xlu0 %1762
    %v1765 = vadd.f32 %v1755, %v1763
    %v1766 = vtanh.pop %v1765
    %1768 = vrot.lane.b32.xlu0 %v1766, 64
    %v1769 = vpop.permute.xlu0 %1768
    %v1771 = vmul.f32 %v1754, %v1769
    %v1772 = vld [vmem:[%s833] sm:$0xff]
    %1774 = vrot.lane.b32.xlu0 %v1771, 32
    %v1775 = vpop.permute.xlu0 %1774
    %v1776 = vsel %vm228, %v1775, 0
    %1778 = vmatprep.subr.mxu0 0.0
    %1779 = vmatpush1.msra.mxu0 %v1039
    %1780 = vmatprep.subr.mxu0 0.0
    %1781 = vmatpush1.msra.mxu0 %v1040
    %1782 = vmatprep.subr.mxu0 0.0
    %1783 = vmatpush1.msra.mxu0 %v1041
    %1784 = vmatprep.subr.mxu0 0.0
    %1785 = vmatpush1.msra.mxu0 %v1042
    %1786 = vmatprep.subr.mxu0 0.0
    %1787 = vmatpush1.msra.mxu0 0.0
    %1788 = vmatprep.subr.mxu0 0.0
    %1789 = vmatpush1.msra.mxu0 0.0
    %1790 = vmatprep.subr.mxu0 0.0
    %1791 = vmatpush1.msra.mxu0 0.0
    %1792 = vmatprep.subr.mxu0 0.0
    %1793 = vmatpush1.msra.mxu0 0.0
    %1794 = vmatprep.subr.mxu0 0.0
    %1795 = vmatpush1.msra.mxu0 0.0
    %1796 = vmatprep.subr.mxu0 0.0
    %1797 = vmatpush1.msra.mxu0 0.0
    %1798 = vmatprep.subr.mxu0 0.0
    %1799 = vmatpush1.msra.mxu0 0.0
    %1800 = vmatprep.subr.mxu0 0.0
    %1801 = vmatpush1.msra.mxu0 0.0
    %1802 = vmatprep.subr.mxu0 0.0
    %1803 = vmatpush1.msra.mxu0 0.0
    %1804 = vmatprep.subr.mxu0 0.0
    %1805 = vmatpush1.msra.mxu0 0.0
    %1806 = vmatprep.subr.mxu0 0.0
    %1807 = vmatpush1.msra.mxu0 0.0
    %1808 = vmatprep.subr.mxu0 0.0
    %1809 = vmatpush1.msra.mxu0 0.0
    %1810 = vmatprep.subr.mxu0 0.0
    %1811 = vmatpush1.msra.mxu0 0.0
    %1812 = vmatprep.subr.mxu0 0.0
    %1813 = vmatpush1.msra.mxu0 0.0
    %1814 = vmatprep.subr.mxu0 0.0
    %1815 = vmatpush1.msra.mxu0 0.0
    %1816 = vmatprep.subr.mxu0 0.0
    %1817 = vmatpush1.msra.mxu0 0.0
    %1818 = vmatprep.subr.mxu0 0.0
    %1819 = vmatpush1.msra.mxu0 0.0
    %1820 = vmatprep.subr.mxu0 0.0
    %1821 = vmatpush1.msra.mxu0 0.0
    %1822 = vmatprep.subr.mxu0 0.0
    %1823 = vmatpush1.msra.mxu0 0.0
    %1824 = vmatprep.subr.mxu0 0.0
    %1825 = vmatpush1.msra.mxu0 0.0
    %1826 = vmatprep.subr.mxu0 0.0
    %1827 = vmatpush1.msra.mxu0 0.0
    %1828 = vmatprep.subr.mxu0 0.0
    %1829 = vmatpush1.msra.mxu0 0.0
    %1830 = vmatprep.subr.mxu0 0.0
    %1831 = vmatpush1.msra.mxu0 0.0
    %1832 = vmatprep.subr.mxu0 0.0
    %1833 = vmatpush1.msra.mxu0 0.0
    %1834 = vmatprep.subr.mxu0 0.0
    %1835 = vmatpush1.msra.mxu0 0.0
    %1836 = vmatprep.subr.mxu0 0.0
    %1837 = vmatpush1.msra.mxu0 0.0
    %1838 = vmatprep.subr.mxu0 0.0
    %1839 = vmatpush1.msra.mxu0 0.0
    %1840 = vmatprep.subr.mxu0 0.0
    %1841 = vmatpush1.msra.mxu0 0.0
    %1842 = vmatprep.mubr.f32.mxu0 0.0
    %1843 = vmatmul.mubr.f32.gmra.mrb[0].mxu0 %v1776
    %v1844 = vpop.f32.mrb[0].mxu0
    %v1845 = vadd.f32 %v1772, %v1844
    %v1846 = vpop.f32.mrb[0].mxu0
    %1847 = vdwg.mxu0
    %v1848 = vmul.f32 %v1845, %v66
    %v1849 = vtanh.pop %v1848
    %v1850 = vmul.f32 %v1849, %v66
    %v1851 = vadd.f32 %v1850, %v67
    %v1852 = vmul.f32 %v1851, %v1765
    %1854 = vrot.lane.b32.xlu0 %v1851, 64
    %v1855 = vpop.permute.xlu0 %1854
    %v1857 = vmul.f32 %v1851, %v1855
    %1859 = vrot.lane.b32.xlu0 %v1857, 32
    %v1860 = vpop.permute.xlu0 %1859
    %v1862 = vadd.f32 %v1852, %v1860
    %v1863 = vtanh.pop %v1862
    %1865 = vrot.lane.b32.xlu0 %v1863, 64
    %v1866 = vpop.permute.xlu0 %1865
    %v1868 = vmul.f32 %v1851, %v1866
    %v1869 = vld [vmem:[%s934] sm:$0xff]
    %1871 = vrot.lane.b32.xlu0 %v1868, 32
    %v1872 = vpop.permute.xlu0 %1871
    %v1873 = vsel %vm228, %v1872, 0
    %1875 = vmatprep.subr.mxu0 0.0
    %1876 = vmatpush1.msra.mxu0 %v1039
    %1877 = vmatprep.subr.mxu0 0.0
    %1878 = vmatpush1.msra.mxu0 %v1040
    %1879 = vmatprep.subr.mxu0 0.0
    %1880 = vmatpush1.msra.mxu0 %v1041
    %1881 = vmatprep.subr.mxu0 0.0
    %1882 = vmatpush1.msra.mxu0 %v1042
    %1883 = vmatprep.subr.mxu0 0.0
    %1884 = vmatpush1.msra.mxu0 0.0
    %1885 = vmatprep.subr.mxu0 0.0
    %1886 = vmatpush1.msra.mxu0 0.0
    %1887 = vmatprep.subr.mxu0 0.0
    %1888 = vmatpush1.msra.mxu0 0.0
    %1889 = vmatprep.subr.mxu0 0.0
    %1890 = vmatpush1.msra.mxu0 0.0
    %1891 = vmatprep.subr.mxu0 0.0
    %1892 = vmatpush1.msra.mxu0 0.0
    %1893 = vmatprep.subr.mxu0 0.0
    %1894 = vmatpush1.msra.mxu0 0.0
    %1895 = vmatprep.subr.mxu0 0.0
    %1896 = vmatpush1.msra.mxu0 0.0
    %1897 = vmatprep.subr.mxu0 0.0
    %1898 = vmatpush1.msra.mxu0 0.0
    %1899 = vmatprep.subr.mxu0 0.0
    %1900 = vmatpush1.msra.mxu0 0.0
    %1901 = vmatprep.subr.mxu0 0.0
    %1902 = vmatpush1.msra.mxu0 0.0
    %1903 = vmatprep.subr.mxu0 0.0
    %1904 = vmatpush1.msra.mxu0 0.0
    %1905 = vmatprep.subr.mxu0 0.0
    %1906 = vmatpush1.msra.mxu0 0.0
    %1907 = vmatprep.subr.mxu0 0.0
    %1908 = vmatpush1.msra.mxu0 0.0
    %1909 = vmatprep.subr.mxu0 0.0
    %1910 = vmatpush1.msra.mxu0 0.0
    %1911 = vmatprep.subr.mxu0 0.0
    %1912 = vmatpush1.msra.mxu0 0.0
    %1913 = vmatprep.subr.mxu0 0.0
    %1914 = vmatpush1.msra.mxu0 0.0
    %1915 = vmatprep.subr.mxu0 0.0
    %1916 = vmatpush1.msra.mxu0 0.0
    %1917 = vmatprep.subr.mxu0 0.0
    %1918 = vmatpush1.msra.mxu0 0.0
    %1919 = vmatprep.subr.mxu0 0.0
    %1920 = vmatpush1.msra.mxu0 0.0
    %1921 = vmatprep.subr.mxu0 0.0
    %1922 = vmatpush1.msra.mxu0 0.0
    %1923 = vmatprep.subr.mxu0 0.0
    %1924 = vmatpush1.msra.mxu0 0.0
    %1925 = vmatprep.subr.mxu0 0.0
    %1926 = vmatpush1.msra.mxu0 0.0
    %1927 = vmatprep.subr.mxu0 0.0
    %1928 = vmatpush1.msra.mxu0 0.0
    %1929 = vmatprep.subr.mxu0 0.0
    %1930 = vmatpush1.msra.mxu0 0.0
    %1931 = vmatprep.subr.mxu0 0.0
    %1932 = vmatpush1.msra.mxu0 0.0
    %1933 = vmatprep.subr.mxu0 0.0
    %1934 = vmatpush1.msra.mxu0 0.0
    %1935 = vmatprep.subr.mxu0 0.0
    %1936 = vmatpush1.msra.mxu0 0.0
    %1937 = vmatprep.subr.mxu0 0.0
    %1938 = vmatpush1.msra.mxu0 0.0
    %1939 = vmatprep.mubr.f32.mxu0 0.0
    %1940 = vmatmul.mubr.f32.gmra.mrb[0].mxu0 %v1873
    %v1941 = vpop.f32.mrb[0].mxu0
    %v1942 = vadd.f32 %v1869, %v1941
    %v1943 = vpop.f32.mrb[0].mxu0
    %1944 = vdwg.mxu0
    %v1945 = vmul.f32 %v1942, %v66
    %v1946 = vtanh.pop %v1945
    %v1947 = vmul.f32 %v1946, %v66
    %v1948 = vadd.f32 %v1947, %v67
    %v1949 = vmul.f32 %v1948, %v1862
    %1951 = vrot.lane.b32.xlu0 %v1948, 64
    %v1952 = vpop.permute.xlu0 %1951
    %v1954 = vmul.f32 %v1948, %v1952
    %1956 = vrot.lane.b32.xlu0 %v1954, 32
    %v1957 = vpop.permute.xlu0 %1956
    %v1959 = vadd.f32 %v1949, %v1957
    %v1960 = vtanh.pop %v1959
    %1962 = vrot.lane.b32.xlu0 %v1960, 64
    %v1963 = vpop.permute.xlu0 %1962
    %v1965 = vmul.f32 %v1948, %v1963
    %v1966 = vld [vmem:[#allocation8] sm:$0xff]
    %v1967 = vld [vmem:[#allocation8 + $0x8] sm:$0xff]
    %v1968 = vld [vmem:[#allocation8 + $0x10] sm:$0xff]
    %v1969 = vld [vmem:[#allocation8 + $0x18] sm:$0xff]
    %v1970 = vld [vmem:[%s8] sm:$0x1]
    %v1972 = vlaneseq
    %v1973 = vshrl.u32 %v1972, 7
    %v1974 = vsub.s32 0, %v1973
    %v1975 = vrot.slane %v1970, %v1974
    %1978 = vrot.lane.b32.xlu0 %v1965, 32
    %v1979 = vpop.permute.xlu0 %1978
    %v1980 = vsel %vm228, %v1979, 0
    %1982 = vmatprep.subr.mxu0 0.0
    %1983 = vmatpush1.msra.mxu0 %v1966
    %1984 = vmatprep.subr.mxu0 0.0
    %1985 = vmatpush1.msra.mxu0 %v1967
    %1986 = vmatprep.subr.mxu0 0.0
    %1987 = vmatpush1.msra.mxu0 %v1968
    %1988 = vmatprep.subr.mxu0 0.0
    %1989 = vmatpush1.msra.mxu0 %v1969
    %1990 = vmatprep.subr.mxu0 0.0
    %1991 = vmatpush1.msra.mxu0 0.0
    %1992 = vmatprep.subr.mxu0 0.0
    %1993 = vmatpush1.msra.mxu0 0.0
    %1994 = vmatprep.subr.mxu0 0.0
    %1995 = vmatpush1.msra.mxu0 0.0
    %1996 = vmatprep.subr.mxu0 0.0
    %1997 = vmatpush1.msra.mxu0 0.0
    %1998 = vmatprep.subr.mxu0 0.0
    %1999 = vmatpush1.msra.mxu0 0.0
    %2000 = vmatprep.subr.mxu0 0.0
    %2001 = vmatpush1.msra.mxu0 0.0
    %2002 = vmatprep.subr.mxu0 0.0
    %2003 = vmatpush1.msra.mxu0 0.0
    %2004 = vmatprep.subr.mxu0 0.0
    %2005 = vmatpush1.msra.mxu0 0.0
    %2006 = vmatprep.subr.mxu0 0.0
    %2007 = vmatpush1.msra.mxu0 0.0
    %2008 = vmatprep.subr.mxu0 0.0
    %2009 = vmatpush1.msra.mxu0 0.0
    %2010 = vmatprep.subr.mxu0 0.0
    %2011 = vmatpush1.msra.mxu0 0.0
    %2012 = vmatprep.subr.mxu0 0.0
    %2013 = vmatpush1.msra.mxu0 0.0
    %2014 = vmatprep.subr.mxu0 0.0
    %2015 = vmatpush1.msra.mxu0 0.0
    %2016 = vmatprep.subr.mxu0 0.0
    %2017 = vmatpush1.msra.mxu0 0.0
    %2018 = vmatprep.subr.mxu0 0.0
    %2019 = vmatpush1.msra.mxu0 0.0
    %2020 = vmatprep.subr.mxu0 0.0
    %2021 = vmatpush1.msra.mxu0 0.0
    %2022 = vmatprep.subr.mxu0 0.0
    %2023 = vmatpush1.msra.mxu0 0.0
    %2024 = vmatprep.subr.mxu0 0.0
    %2025 = vmatpush1.msra.mxu0 0.0
    %2026 = vmatprep.subr.mxu0 0.0
    %2027 = vmatpush1.msra.mxu0 0.0
    %2028 = vmatprep.subr.mxu0 0.0
    %2029 = vmatpush1.msra.mxu0 0.0
    %2030 = vmatprep.subr.mxu0 0.0
    %2031 = vmatpush1.msra.mxu0 0.0
    %2032 = vmatprep.subr.mxu0 0.0
    %2033 = vmatpush1.msra.mxu0 0.0
    %2034 = vmatprep.subr.mxu0 0.0
    %2035 = vmatpush1.msra.mxu0 0.0
    %2036 = vmatprep.subr.mxu0 0.0
    %2037 = vmatpush1.msra.mxu0 0.0
    %2038 = vmatprep.subr.mxu0 0.0
    %2039 = vmatpush1.msra.mxu0 0.0
    %2040 = vmatprep.subr.mxu0 0.0
    %2041 = vmatpush1.msra.mxu0 0.0
    %2042 = vmatprep.subr.mxu0 0.0
    %2043 = vmatpush1.msra.mxu0 0.0
    %2044 = vmatprep.subr.mxu0 0.0
    %2045 = vmatpush1.msra.mxu0 0.0
    %2046 = vmatprep.mubr.f32.mxu0 0.0
    %2047 = vmatmul.mubr.f32.gmra.mrb[0].mxu0 %v1980
    %v2048 = vpop.f32.mrb[0].mxu0
    %v2049 = vadd.f32 %v1975, %v2048
    %v2050 = vpop.f32.mrb[0].mxu0
    %2051 = vdwg.mxu0
    %2052 = vst [vmem:[#allocation10] sm:$0xff] %v2049
    // Predicated region
    $region46: #{tpu_custom_call.1} parent=1 // pred_check
      _
    $region47: #{tpu_custom_call.1} parent=1 // pred_check_branch
      %2054 = sbr.rel (0) target = $region49
    $region48: #{tpu_custom_call.1} parent=1 // pred_region
      %s2056 = ssub.s32 128, 128
      %2057 = vsyncadd [#allocation7], %s2056
      %s2059 = sshll.u32 [#allocation10], 4
      %s2060 = int_to_ptr.vmem [resolvable:$true] %s2059
      %2062 = dma.vmem_to_hbm [thread:$0]  %s2060, 128, %s9, [#allocation7]
    $region49: #{tpu_custom_call.1} parent=1 // pred_fallthru
      _
    // Predicated region
    $region50: #{tpu_custom_call.1} parent=1 // pred_check
      _
    $region51: #{tpu_custom_call.1} parent=1 // pred_check_branch
      %2064 = sbr.rel (0) target = $region53
    $region52: #{tpu_custom_call.1} parent=1 // pred_region
      %2065 = dma.done [#allocation7], 128
    $region53: #{tpu_custom_call.1} parent=1 // pred_fallthru
      _
    %2066 = vsyncpa [#allocation6], 1
    %2067 = vsyncpa [#allocation9], 1
    %2068 = vsyncpa [#allocation7], 1

</llo_original>
